<compile_context>
chip_gen: v6e
topology: v6e:2x2x1
jax: 0.10.0
libtpu: 0.0.40
codegen_flags: <defaults>
</compile_context>

<pallas_src>
import jax
import jax.numpy as jnp
import numpy as np
from jax.experimental import pallas as pl
from jax.experimental.pallas import tpu as pltpu

INPUT_DIM = 16
MODEL_DIM = 128
NUM_HEADS = 8          # head_dim = 16; softmax over 1 key -> identity, heads fold away
NUM_LAYERS = 4
FFN_DIM = 128
CLS_HIDDEN = 64
NUM_CLASSES = 3
EPS = 1e-5

BATCH = 16


def _layernorm(x, g, b):
    # Single-pass LN: var = E[x^2] - mean^2 (one fewer cross-lane reduce).
    mu = jnp.mean(x, axis=-1, keepdims=True)
    ms = jnp.mean(x * x, axis=-1, keepdims=True)
    var = ms - mu * mu
    return (x - mu) * jax.lax.rsqrt(var + EPS) * g + b


def _bdot(a, w):
    # bf16 operands on the MXU, f32 accumulation.
    return jnp.dot(a.astype(jnp.bfloat16), w, preferred_element_type=jnp.float32)


def _kernel(x_ref, w_ref, v_ref, lw_ref, lv_ref, out_ref):
    # Non-layer vectors: [b_in, g0, be0, bc1, bc2, 0, 0, 0]
    v = v_ref[...]
    b_in, g0, be0, bc1, bc2 = v[0:1], v[1:2], v[2:3], v[3:4], v[4:5]

    # input_proj (K padded 16 -> 128 with zeros host-side; exact) + pre-encoder LN
    h = jnp.dot(x_ref[...].astype(jnp.bfloat16), w_ref[0],
                preferred_element_type=jnp.float32) + b_in
    h = _layernorm(h, g0, be0)
    x_res = h  # saved for the final `x + transformed` residual

    # TransformerEncoder: NUM_LAYERS post-norm encoder layers (static unroll)
    for l in range(NUM_LAYERS):
        lw = lw_ref[l]          # (128, 384) bf16: [wvo | w1 | w2]
        lv = lv_ref[l]          # (8, 128)  f32:  [bvo, ln1g, ln1b, bf1, bf2, ln2g, ln2b, 0]
        bvo, ln1g, ln1b = lv[0:1], lv[1:2], lv[2:3]
        bf1, bf2, ln2g, ln2b = lv[3:4], lv[4:5], lv[5:6], lv[6:7]

        # --- self-attention block, folded: attn = h @ (Wv@Wo) + (bv@Wo + bo) ---
        h_b = h.astype(jnp.bfloat16)
        attn = jnp.dot(h_b, lw[:, 0:MODEL_DIM],
                       preferred_element_type=jnp.float32) + bvo
        h = _layernorm(h + attn, ln1g, ln1b)

        # --- feed-forward (Linear -> ReLU -> Linear), post-norm ---
        h_b = h.astype(jnp.bfloat16)
        ff = jnp.dot(h_b, lw[:, MODEL_DIM:MODEL_DIM + FFN_DIM],
                     preferred_element_type=jnp.float32) + bf1
        ff_b = jnp.maximum(ff, 0.0).astype(jnp.bfloat16)   # ReLU; stay bf16 into w2
        ff = jnp.dot(ff_b, lw[:, MODEL_DIM + FFN_DIM:],
                     preferred_element_type=jnp.float32) + bf2
        h = _layernorm(h + ff, ln2g, ln2b)

    # residual around the whole encoder (seq dim of length 1 is implicit)
    y = x_res + h

    # cls_head: Linear(128,64)->ReLU->Linear(64,3), padded to 128 lanes so the
    # output store is full-lane (unmasked vst); wrapper slices [:, :3].
    c = jnp.maximum(jnp.dot(y.astype(jnp.bfloat16), w_ref[1],
                            preferred_element_type=jnp.float32) + bc1, 0.0)
    out_ref[...] = jnp.dot(c.astype(jnp.bfloat16), w_ref[2],
                           preferred_element_type=jnp.float32) + bc2


def _num_grid_steps(batch):
    """Split across the two v7x TensorCores only once each core's M tile can
    feed the MXU (>=128 rows/core, i.e. batch >= 256).  On 1-TC chips
    (v5e/v6e) or at small batch, a multi-step grid only duplicates weight DMA
    and adds pipeline overhead, so use a single step."""
    try:
        kind = jax.devices()[0].device_kind.lower()
    except Exception:
        kind = ""
    if ("v7" in kind or "7x" in kind) and batch >= 256 and batch % 2 == 0:
        return 2
    return 1


def prepare_params(params):
    """Host-side algebraic fold, lane padding and operand packing."""
    (w_in, b_in, g0, be0, wqkv, bqkv, wo, bo,
     ln1g, ln1b, w1, bf1, w2, bf2, ln2g, ln2b,
     wc1, bc1, wc2, bc2) = params
    hp = jax.lax.Precision.HIGHEST

    # seq_len == 1 => attention output == V exactly, so fold Wv@Wo.
    wv = wqkv[:, :, 2 * MODEL_DIM:]                                 # (L, 128, 128)
    bv = bqkv[:, :, 2 * MODEL_DIM:]                                 # (L, 1, 128)
    wvo = jnp.einsum('lij,ljk->lik', wv, wo, precision=hp)          # (L, 128, 128)
    bvo = jnp.einsum('lij,ljk->lik', bv, wo, precision=hp) + bo     # (L, 1, 128)

    # Lane padding: input features 16->128, cls hidden 64->128, classes 3->128.
    w_in_p = jnp.zeros((MODEL_DIM, MODEL_DIM), jnp.float32).at[:INPUT_DIM].set(w_in)
    wc1_p = jnp.zeros((MODEL_DIM, MODEL_DIM), jnp.float32).at[:, :CLS_HIDDEN].set(wc1)
    wc2_p = jnp.zeros((MODEL_DIM, MODEL_DIM), jnp.float32).at[:CLS_HIDDEN, :NUM_CLASSES].set(wc2)
    bc1_p = jnp.zeros((1, MODEL_DIM), jnp.float32).at[:, :CLS_HIDDEN].set(bc1)
    bc2_p = jnp.zeros((1, MODEL_DIM), jnp.float32).at[:, :NUM_CLASSES].set(bc2)

    # Packed operands (5 total).
    w_stack = jnp.stack([w_in_p, wc1_p, wc2_p], axis=0).astype(jnp.bfloat16)   # (3,128,128)
    v_stack = jnp.concatenate(
        [b_in, g0, be0, bc1_p, bc2_p, jnp.zeros((3, MODEL_DIM), jnp.float32)],
        axis=0)                                                                 # (8,128)
    lw_stack = jnp.concatenate([wvo, w1, w2], axis=2).astype(jnp.bfloat16)      # (L,128,384)
    lv_stack = jnp.concatenate(
        [bvo, ln1g, ln1b, bf1, bf2, ln2g, ln2b,
         jnp.zeros((NUM_LAYERS, 1, MODEL_DIM), jnp.float32)], axis=1)           # (L,8,128)
    return (w_stack, v_stack, lw_stack, lv_stack)


def tabular_transformer(x, prepared):
    w_stack, v_stack, lw_stack, lv_stack = prepared
    B = x.shape[0]
    Bp = ((B + 7) // 8) * 8                     # sublane-aligned batch
    steps = _num_grid_steps(Bp)
    if Bp % steps:
        steps = 1
    BB = Bp // steps
    multi = steps > 1

    # Zero-pad input to (Bp, 128): full-lane loads, K=128 matmul feed (exact).
    x_pad = jnp.zeros((Bp, MODEL_DIM), x.dtype).at[:B, :x.shape[1]].set(x)

    def rep(shape):
        zeros = (0,) * len(shape)
        if multi:
            # Constant block index across the grid: nothing to pipeline.
            return pl.BlockSpec(shape, lambda i, z=zeros: z,
                                pipeline_mode=pl.Buffered(1))
        return pl.BlockSpec(shape, lambda i, z=zeros: z)

    in_specs = [pl.BlockSpec((BB, MODEL_DIM), lambda i: (i, 0)),
                rep(w_stack.shape), rep(v_stack.shape),
                rep(lw_stack.shape), rep(lv_stack.shape)]

    # Advisory cost estimate (padded dims); weights are DMA'd once per step.
    mm = MODEL_DIM * MODEL_DIM
    flops = 2 * Bp * mm * (1 + 3 * NUM_LAYERS + 2)
    weight_bytes = sum(int(np.prod(a.shape)) * a.dtype.itemsize
                       for a in (w_stack, v_stack, lw_stack, lv_stack))
    bytes_accessed = (int(x_pad.size) * x_pad.dtype.itemsize
                      + Bp * MODEL_DIM * 4
                      + steps * weight_bytes)
    cost = pl.CostEstimate(flops=flops,
                           transcendentals=Bp * (1 + 2 * NUM_LAYERS),
                           bytes_accessed=bytes_accessed)

    out = pl.pallas_call(
        _kernel,
        out_shape=jax.ShapeDtypeStruct((Bp, MODEL_DIM), jnp.float32),
        grid=(steps,),
        in_specs=in_specs,
        out_specs=pl.BlockSpec((BB, MODEL_DIM), lambda i: (i, 0)),
        compiler_params=pltpu.CompilerParams(
            dimension_semantics=("parallel",)),
        cost_estimate=cost,
    )(x_pad, w_stack, v_stack, lw_stack, lv_stack)
    return out[:B, :NUM_CLASSES]


def init_params(key):
    ks = list(jax.random.split(key, 16))
    def nrm(k, shape, scale=0.05):
        return (scale * jax.random.normal(k, shape)).astype(jnp.float32)

    w_in = nrm(ks[0], (INPUT_DIM, MODEL_DIM))
    b_in = nrm(ks[1], (1, MODEL_DIM))
    g0 = jnp.ones((1, MODEL_DIM), jnp.float32)
    be0 = jnp.zeros((1, MODEL_DIM), jnp.float32)

    L = NUM_LAYERS
    wqkv = nrm(ks[2], (L, MODEL_DIM, 3 * MODEL_DIM))   # in_proj_weight.T, cols = [q|k|v]
    bqkv = nrm(ks[3], (L, 1, 3 * MODEL_DIM))
    wo = nrm(ks[4], (L, MODEL_DIM, MODEL_DIM))         # out_proj.weight.T
    bo = nrm(ks[5], (L, 1, MODEL_DIM))
    ln1g = jnp.ones((L, 1, MODEL_DIM), jnp.float32)
    ln1b = jnp.zeros((L, 1, MODEL_DIM), jnp.float32)
    w1 = nrm(ks[6], (L, MODEL_DIM, FFN_DIM))
    bf1 = nrm(ks[7], (L, 1, FFN_DIM))
    w2 = nrm(ks[8], (L, FFN_DIM, MODEL_DIM))
    bf2 = nrm(ks[9], (L, 1, MODEL_DIM))
    ln2g = jnp.ones((L, 1, MODEL_DIM), jnp.float32)
    ln2b = jnp.zeros((L, 1, MODEL_DIM), jnp.float32)

    wc1 = nrm(ks[10], (MODEL_DIM, CLS_HIDDEN))
    bc1 = nrm(ks[11], (1, CLS_HIDDEN))
    wc2 = nrm(ks[12], (CLS_HIDDEN, NUM_CLASSES))
    bc2 = nrm(ks[13], (1, NUM_CLASSES))

    return (w_in, b_in, g0, be0, wqkv, bqkv, wo, bo,
            ln1g, ln1b, w1, bf1, w2, bf2, ln2g, ln2b,
            wc1, bc1, wc2, bc2)


def reference_forward_prepared(x, prepared):
    """Pure-JAX reference with the SAME packed / folded / bf16-weight math."""
    w_stack, v_stack, lw_stack, lv_stack = prepared
    b_in, g0, be0 = v_stack[0:1], v_stack[1:2], v_stack[2:3]
    bc1, bc2 = v_stack[3:4], v_stack[4:5]
    x_pad = jnp.zeros((x.shape[0], MODEL_DIM), x.dtype).at[:, :x.shape[1]].set(x)

    h = _bdot(x_pad, w_stack[0]) + b_in
    h = _layernorm(h, g0, be0)
    x_res = h
    for l in range(NUM_LAYERS):
        lw, lv = lw_stack[l], lv_stack[l]
        attn = _bdot(h, lw[:, :MODEL_DIM]) + lv[0:1]
        h = _layernorm(h + attn, lv[1:2], lv[2:3])
        ff = _bdot(h, lw[:, MODEL_DIM:MODEL_DIM + FFN_DIM]) + lv[3:4]
        ff = _bdot(jnp.maximum(ff, 0.0), lw[:, MODEL_DIM + FFN_DIM:]) + lv[4:5]
        h = _layernorm(h + ff, lv[5:6], lv[6:7])
    y = x_res + h
    c = jnp.maximum(_bdot(y, w_stack[1]) + bc1, 0.0)
    return (_bdot(c, w_stack[2]) + bc2)[:, :NUM_CLASSES]


def reference_forward_f32(x, params):
    """Original (unfolded, f32) algebra of the PyTorch module in eval mode."""
    (w_in, b_in, g0, be0, wqkv, bqkv, wo, bo,
     ln1g, ln1b, w1, bf1, w2, bf2, ln2g, ln2b,
     wc1, bc1, wc2, bc2) = params
    hp = jax.lax.Precision.HIGHEST
    h = jnp.dot(x, w_in, precision=hp) + b_in
    h = _layernorm(h, g0, be0)
    x_res = h
    for l in range(NUM_LAYERS):
        qkv = jnp.dot(h, wqkv[l], precision=hp) + bqkv[l]
        v = qkv[:, 2 * MODEL_DIM:]                     # softmax over 1 key == 1
        attn = jnp.dot(v, wo[l], precision=hp) + bo[l]
        h = _layernorm(h + attn, ln1g[l], ln1b[l])
        ff = jnp.maximum(jnp.dot(h, w1[l], precision=hp) + bf1[l], 0.0)
        ff = jnp.dot(ff, w2[l], precision=hp) + bf2[l]
        h = _layernorm(h + ff, ln2g[l], ln2b[l])
    y = x_res + h
    c = jnp.maximum(jnp.dot(y, wc1, precision=hp) + bc1, 0.0)
    return jnp.dot(c, wc2, precision=hp) + bc2


if __name__ == "__main__":
    key = jax.random.PRNGKey(0)
    kx, kp = jax.random.split(key)
    x = jax.random.normal(kx, (BATCH, INPUT_DIM), dtype=jnp.float32)
    params = init_params(kp)
    prepared = prepare_params(params)

    out = jax.block_until_ready(tabular_transformer(x, prepared))
    ref = jax.block_until_ready(reference_forward_prepared(x, prepared))
    ref_f32 = jax.block_until_ready(reference_forward_f32(x, params))

    assert out.shape == (BATCH, NUM_CLASSES)
    # Strict: kernel vs. identical packed/folded/bf16 math in plain JAX.
    np.testing.assert_allclose(np.asarray(out), np.asarray(ref), rtol=2e-3, atol=2e-3)
    # Loose: kernel vs. original unfolded f32 module algebra (bf16 quantization only).
    np.testing.assert_allclose(np.asarray(out), np.asarray(ref_f32), rtol=5e-2, atol=5e-2)
    print("KERNEL_OK")
</pallas_src>

<mosaic_0001>
module attributes {stable_mosaic.version = 11 : i64} {
  func.func @_kernel(%arg0: i32, %arg1: memref<16x128xf32, #tpu.memory_space<vmem>>, %arg2: memref<3x128x128xbf16, #tpu.memory_space<vmem>>, %arg3: memref<8x128xf32, #tpu.memory_space<vmem>>, %arg4: memref<4x128x384xbf16, #tpu.memory_space<vmem>>, %arg5: memref<4x8x128xf32, #tpu.memory_space<vmem>>, %arg6: memref<16x128xf32, #tpu.memory_space<vmem>>) attributes {dimension_semantics = [#tpu.dimension_semantics<parallel>], iteration_bounds = array<i64: 1>, scalar_prefetch = 0 : i64, scratch_operands = 0 : i64, tpu.core_type = #tpu.core_type<tc>, window_params = [{transform_indices = @transform_0, window_bounds = array<i64: 16, 128>}, {pipeline_mode = #tpu.pipeline_mode<synchronous>, transform_indices = @transform_1, window_bounds = array<i64: 3, 128, 128>}, {pipeline_mode = #tpu.pipeline_mode<synchronous>, transform_indices = @transform_2, window_bounds = array<i64: 8, 128>}, {pipeline_mode = #tpu.pipeline_mode<synchronous>, transform_indices = @transform_3, window_bounds = array<i64: 4, 128, 384>}, {pipeline_mode = #tpu.pipeline_mode<synchronous>, transform_indices = @transform_4, window_bounds = array<i64: 4, 8, 128>}, {transform_indices = @transform_5, window_bounds = array<i64: 16, 128>}]} {
    %c0 = arith.constant 0 : index
    %c0_0 = arith.constant 0 : index
    %0 = vector.load %arg3[%c0, %c0_0] : memref<8x128xf32, #tpu.memory_space<vmem>>, vector<8x128xf32>
    %1 = vector.extract_strided_slice %0 {offsets = [0, 0], sizes = [1, 128], strides = [1, 1]} : vector<8x128xf32> to vector<1x128xf32>
    %2 = vector.extract_strided_slice %0 {offsets = [1, 0], sizes = [1, 128], strides = [1, 1]} : vector<8x128xf32> to vector<1x128xf32>
    %3 = vector.extract_strided_slice %0 {offsets = [2, 0], sizes = [1, 128], strides = [1, 1]} : vector<8x128xf32> to vector<1x128xf32>
    %4 = vector.extract_strided_slice %0 {offsets = [3, 0], sizes = [1, 128], strides = [1, 1]} : vector<8x128xf32> to vector<1x128xf32>
    %5 = vector.extract_strided_slice %0 {offsets = [4, 0], sizes = [1, 128], strides = [1, 1]} : vector<8x128xf32> to vector<1x128xf32>
    %c0_1 = arith.constant 0 : index
    %c0_2 = arith.constant 0 : index
    %6 = vector.load %arg1[%c0_1, %c0_2] : memref<16x128xf32, #tpu.memory_space<vmem>>, vector<16x128xf32>
    %7 = arith.truncf %6 : vector<16x128xf32> to vector<16x128xbf16>
    %c0_3 = arith.constant 0 : index
    %c0_4 = arith.constant 0 : index
    %c0_5 = arith.constant 0 : index
    %8 = vector.load %arg2[%c0_3, %c0_4, %c0_5] : memref<3x128x128xbf16, #tpu.memory_space<vmem>>, vector<1x128x128xbf16>
    %9 = vector.shape_cast %8 : vector<1x128x128xbf16> to vector<128x128xbf16>
    %cst = arith.constant dense<0.000000e+00> : vector<16x128xf32>
    %10 = tpu.matmul %7, %9, %cst {dimension_numbers = #tpu.dot_dimension_numbers<[1], [0], [0], [1], [0, 0, 1, 1], [], []>} : vector<16x128xbf16>, vector<128x128xbf16>, vector<16x128xf32> -> vector<16x128xf32>
    %11 = vector.broadcast %1 : vector<1x128xf32> to vector<16x128xf32>
    %12 = arith.addf %10, %11 : vector<16x128xf32>
    %cst_6 = arith.constant dense<0.000000e+00> : vector<16xf32>
    %13 = vector.multi_reduction <add>, %12, %cst_6 [1] : vector<16x128xf32> to vector<16xf32>
    %14 = vector.shape_cast %13 : vector<16xf32> to vector<16x1xf32>
    %cst_7 = arith.constant 1.280000e+02 : f32
    %15 = vector.broadcast %cst_7 : f32 to vector<16x1xf32>
    %16 = arith.divf %14, %15 : vector<16x1xf32>
    %17 = arith.mulf %12, %12 : vector<16x128xf32>
    %cst_8 = arith.constant dense<0.000000e+00> : vector<16xf32>
    %18 = vector.multi_reduction <add>, %17, %cst_8 [1] : vector<16x128xf32> to vector<16xf32>
    %19 = vector.shape_cast %18 : vector<16xf32> to vector<16x1xf32>
    %cst_9 = arith.constant 1.280000e+02 : f32
    %20 = vector.broadcast %cst_9 : f32 to vector<16x1xf32>
    %21 = arith.divf %19, %20 : vector<16x1xf32>
    %22 = arith.mulf %16, %16 : vector<16x1xf32>
    %23 = arith.subf %21, %22 : vector<16x1xf32>
    %24 = vector.broadcast %16 : vector<16x1xf32> to vector<16x128xf32>
    %25 = arith.subf %12, %24 : vector<16x128xf32>
    %cst_10 = arith.constant 9.99999974E-6 : f32
    %26 = vector.broadcast %cst_10 : f32 to vector<16x1xf32>
    %27 = arith.addf %23, %26 : vector<16x1xf32>
    %28 = math.rsqrt %27 : vector<16x1xf32>
    %29 = vector.broadcast %28 : vector<16x1xf32> to vector<16x128xf32>
    %30 = arith.mulf %25, %29 : vector<16x128xf32>
    %31 = vector.broadcast %2 : vector<1x128xf32> to vector<16x128xf32>
    %32 = arith.mulf %30, %31 : vector<16x128xf32>
    %33 = vector.broadcast %3 : vector<1x128xf32> to vector<16x128xf32>
    %34 = arith.addf %32, %33 : vector<16x128xf32>
    %c0_11 = arith.constant 0 : index
    %c0_12 = arith.constant 0 : index
    %c0_13 = arith.constant 0 : index
    %35 = vector.load %arg4[%c0_11, %c0_12, %c0_13] : memref<4x128x384xbf16, #tpu.memory_space<vmem>>, vector<1x128x384xbf16>
    %36 = vector.shape_cast %35 : vector<1x128x384xbf16> to vector<128x384xbf16>
    %c0_14 = arith.constant 0 : index
    %c0_15 = arith.constant 0 : index
    %c0_16 = arith.constant 0 : index
    %37 = vector.load %arg5[%c0_14, %c0_15, %c0_16] : memref<4x8x128xf32, #tpu.memory_space<vmem>>, vector<1x8x128xf32>
    %38 = vector.shape_cast %37 : vector<1x8x128xf32> to vector<8x128xf32>
    %39 = vector.extract_strided_slice %38 {offsets = [0, 0], sizes = [1, 128], strides = [1, 1]} : vector<8x128xf32> to vector<1x128xf32>
    %40 = vector.extract_strided_slice %38 {offsets = [1, 0], sizes = [1, 128], strides = [1, 1]} : vector<8x128xf32> to vector<1x128xf32>
    %41 = vector.extract_strided_slice %38 {offsets = [2, 0], sizes = [1, 128], strides = [1, 1]} : vector<8x128xf32> to vector<1x128xf32>
    %42 = vector.extract_strided_slice %38 {offsets = [3, 0], sizes = [1, 128], strides = [1, 1]} : vector<8x128xf32> to vector<1x128xf32>
    %43 = vector.extract_strided_slice %38 {offsets = [4, 0], sizes = [1, 128], strides = [1, 1]} : vector<8x128xf32> to vector<1x128xf32>
    %44 = vector.extract_strided_slice %38 {offsets = [5, 0], sizes = [1, 128], strides = [1, 1]} : vector<8x128xf32> to vector<1x128xf32>
    %45 = vector.extract_strided_slice %38 {offsets = [6, 0], sizes = [1, 128], strides = [1, 1]} : vector<8x128xf32> to vector<1x128xf32>
    %46 = arith.truncf %34 : vector<16x128xf32> to vector<16x128xbf16>
    %47 = vector.extract_strided_slice %36 {offsets = [0, 0], sizes = [128, 128], strides = [1, 1]} : vector<128x384xbf16> to vector<128x128xbf16>
    %cst_17 = arith.constant dense<0.000000e+00> : vector<16x128xf32>
    %48 = tpu.matmul %46, %47, %cst_17 {dimension_numbers = #tpu.dot_dimension_numbers<[1], [0], [0], [1], [0, 0, 1, 1], [], []>} : vector<16x128xbf16>, vector<128x128xbf16>, vector<16x128xf32> -> vector<16x128xf32>
    %49 = vector.broadcast %39 : vector<1x128xf32> to vector<16x128xf32>
    %50 = arith.addf %48, %49 : vector<16x128xf32>
    %51 = arith.addf %34, %50 : vector<16x128xf32>
    %cst_18 = arith.constant dense<0.000000e+00> : vector<16xf32>
    %52 = vector.multi_reduction <add>, %51, %cst_18 [1] : vector<16x128xf32> to vector<16xf32>
    %53 = vector.shape_cast %52 : vector<16xf32> to vector<16x1xf32>
    %cst_19 = arith.constant 1.280000e+02 : f32
    %54 = vector.broadcast %cst_19 : f32 to vector<16x1xf32>
    %55 = arith.divf %53, %54 : vector<16x1xf32>
    %56 = arith.mulf %51, %51 : vector<16x128xf32>
    %cst_20 = arith.constant dense<0.000000e+00> : vector<16xf32>
    %57 = vector.multi_reduction <add>, %56, %cst_20 [1] : vector<16x128xf32> to vector<16xf32>
    %58 = vector.shape_cast %57 : vector<16xf32> to vector<16x1xf32>
    %cst_21 = arith.constant 1.280000e+02 : f32
    %59 = vector.broadcast %cst_21 : f32 to vector<16x1xf32>
    %60 = arith.divf %58, %59 : vector<16x1xf32>
    %61 = arith.mulf %55, %55 : vector<16x1xf32>
    %62 = arith.subf %60, %61 : vector<16x1xf32>
    %63 = vector.broadcast %55 : vector<16x1xf32> to vector<16x128xf32>
    %64 = arith.subf %51, %63 : vector<16x128xf32>
    %cst_22 = arith.constant 9.99999974E-6 : f32
    %65 = vector.broadcast %cst_22 : f32 to vector<16x1xf32>
    %66 = arith.addf %62, %65 : vector<16x1xf32>
    %67 = math.rsqrt %66 : vector<16x1xf32>
    %68 = vector.broadcast %67 : vector<16x1xf32> to vector<16x128xf32>
    %69 = arith.mulf %64, %68 : vector<16x128xf32>
    %70 = vector.broadcast %40 : vector<1x128xf32> to vector<16x128xf32>
    %71 = arith.mulf %69, %70 : vector<16x128xf32>
    %72 = vector.broadcast %41 : vector<1x128xf32> to vector<16x128xf32>
    %73 = arith.addf %71, %72 : vector<16x128xf32>
    %74 = arith.truncf %73 : vector<16x128xf32> to vector<16x128xbf16>
    %75 = vector.extract_strided_slice %36 {offsets = [0, 128], sizes = [128, 128], strides = [1, 1]} : vector<128x384xbf16> to vector<128x128xbf16>
    %cst_23 = arith.constant dense<0.000000e+00> : vector<16x128xf32>
    %76 = tpu.matmul %74, %75, %cst_23 {dimension_numbers = #tpu.dot_dimension_numbers<[1], [0], [0], [1], [0, 0, 1, 1], [], []>} : vector<16x128xbf16>, vector<128x128xbf16>, vector<16x128xf32> -> vector<16x128xf32>
    %77 = vector.broadcast %42 : vector<1x128xf32> to vector<16x128xf32>
    %78 = arith.addf %76, %77 : vector<16x128xf32>
    %cst_24 = arith.constant 0.000000e+00 : f32
    %79 = vector.broadcast %cst_24 : f32 to vector<16x128xf32>
    %80 = arith.maximumf %78, %79 : vector<16x128xf32>
    %81 = arith.truncf %80 : vector<16x128xf32> to vector<16x128xbf16>
    %82 = vector.extract_strided_slice %36 {offsets = [0, 256], sizes = [128, 128], strides = [1, 1]} : vector<128x384xbf16> to vector<128x128xbf16>
    %cst_25 = arith.constant dense<0.000000e+00> : vector<16x128xf32>
    %83 = tpu.matmul %81, %82, %cst_25 {dimension_numbers = #tpu.dot_dimension_numbers<[1], [0], [0], [1], [0, 0, 1, 1], [], []>} : vector<16x128xbf16>, vector<128x128xbf16>, vector<16x128xf32> -> vector<16x128xf32>
    %84 = vector.broadcast %43 : vector<1x128xf32> to vector<16x128xf32>
    %85 = arith.addf %83, %84 : vector<16x128xf32>
    %86 = arith.addf %73, %85 : vector<16x128xf32>
    %cst_26 = arith.constant dense<0.000000e+00> : vector<16xf32>
    %87 = vector.multi_reduction <add>, %86, %cst_26 [1] : vector<16x128xf32> to vector<16xf32>
    %88 = vector.shape_cast %87 : vector<16xf32> to vector<16x1xf32>
    %cst_27 = arith.constant 1.280000e+02 : f32
    %89 = vector.broadcast %cst_27 : f32 to vector<16x1xf32>
    %90 = arith.divf %88, %89 : vector<16x1xf32>
    %91 = arith.mulf %86, %86 : vector<16x128xf32>
    %cst_28 = arith.constant dense<0.000000e+00> : vector<16xf32>
    %92 = vector.multi_reduction <add>, %91, %cst_28 [1] : vector<16x128xf32> to vector<16xf32>
    %93 = vector.shape_cast %92 : vector<16xf32> to vector<16x1xf32>
    %cst_29 = arith.constant 1.280000e+02 : f32
    %94 = vector.broadcast %cst_29 : f32 to vector<16x1xf32>
    %95 = arith.divf %93, %94 : vector<16x1xf32>
    %96 = arith.mulf %90, %90 : vector<16x1xf32>
    %97 = arith.subf %95, %96 : vector<16x1xf32>
    %98 = vector.broadcast %90 : vector<16x1xf32> to vector<16x128xf32>
    %99 = arith.subf %86, %98 : vector<16x128xf32>
    %cst_30 = arith.constant 9.99999974E-6 : f32
    %100 = vector.broadcast %cst_30 : f32 to vector<16x1xf32>
    %101 = arith.addf %97, %100 : vector<16x1xf32>
    %102 = math.rsqrt %101 : vector<16x1xf32>
    %103 = vector.broadcast %102 : vector<16x1xf32> to vector<16x128xf32>
    %104 = arith.mulf %99, %103 : vector<16x128xf32>
    %105 = vector.broadcast %44 : vector<1x128xf32> to vector<16x128xf32>
    %106 = arith.mulf %104, %105 : vector<16x128xf32>
    %107 = vector.broadcast %45 : vector<1x128xf32> to vector<16x128xf32>
    %108 = arith.addf %106, %107 : vector<16x128xf32>
    %c1 = arith.constant 1 : index
    %c0_31 = arith.constant 0 : index
    %c0_32 = arith.constant 0 : index
    %109 = vector.load %arg4[%c1, %c0_31, %c0_32] : memref<4x128x384xbf16, #tpu.memory_space<vmem>>, vector<1x128x384xbf16>
    %110 = vector.shape_cast %109 : vector<1x128x384xbf16> to vector<128x384xbf16>
    %c1_33 = arith.constant 1 : index
    %c0_34 = arith.constant 0 : index
    %c0_35 = arith.constant 0 : index
    %111 = vector.load %arg5[%c1_33, %c0_34, %c0_35] : memref<4x8x128xf32, #tpu.memory_space<vmem>>, vector<1x8x128xf32>
    %112 = vector.shape_cast %111 : vector<1x8x128xf32> to vector<8x128xf32>
    %113 = vector.extract_strided_slice %112 {offsets = [0, 0], sizes = [1, 128], strides = [1, 1]} : vector<8x128xf32> to vector<1x128xf32>
    %114 = vector.extract_strided_slice %112 {offsets = [1, 0], sizes = [1, 128], strides = [1, 1]} : vector<8x128xf32> to vector<1x128xf32>
    %115 = vector.extract_strided_slice %112 {offsets = [2, 0], sizes = [1, 128], strides = [1, 1]} : vector<8x128xf32> to vector<1x128xf32>
    %116 = vector.extract_strided_slice %112 {offsets = [3, 0], sizes = [1, 128], strides = [1, 1]} : vector<8x128xf32> to vector<1x128xf32>
    %117 = vector.extract_strided_slice %112 {offsets = [4, 0], sizes = [1, 128], strides = [1, 1]} : vector<8x128xf32> to vector<1x128xf32>
    %118 = vector.extract_strided_slice %112 {offsets = [5, 0], sizes = [1, 128], strides = [1, 1]} : vector<8x128xf32> to vector<1x128xf32>
    %119 = vector.extract_strided_slice %112 {offsets = [6, 0], sizes = [1, 128], strides = [1, 1]} : vector<8x128xf32> to vector<1x128xf32>
    %120 = arith.truncf %108 : vector<16x128xf32> to vector<16x128xbf16>
    %121 = vector.extract_strided_slice %110 {offsets = [0, 0], sizes = [128, 128], strides = [1, 1]} : vector<128x384xbf16> to vector<128x128xbf16>
    %cst_36 = arith.constant dense<0.000000e+00> : vector<16x128xf32>
    %122 = tpu.matmul %120, %121, %cst_36 {dimension_numbers = #tpu.dot_dimension_numbers<[1], [0], [0], [1], [0, 0, 1, 1], [], []>} : vector<16x128xbf16>, vector<128x128xbf16>, vector<16x128xf32> -> vector<16x128xf32>
    %123 = vector.broadcast %113 : vector<1x128xf32> to vector<16x128xf32>
    %124 = arith.addf %122, %123 : vector<16x128xf32>
    %125 = arith.addf %108, %124 : vector<16x128xf32>
    %cst_37 = arith.constant dense<0.000000e+00> : vector<16xf32>
    %126 = vector.multi_reduction <add>, %125, %cst_37 [1] : vector<16x128xf32> to vector<16xf32>
    %127 = vector.shape_cast %126 : vector<16xf32> to vector<16x1xf32>
    %cst_38 = arith.constant 1.280000e+02 : f32
    %128 = vector.broadcast %cst_38 : f32 to vector<16x1xf32>
    %129 = arith.divf %127, %128 : vector<16x1xf32>
    %130 = arith.mulf %125, %125 : vector<16x128xf32>
    %cst_39 = arith.constant dense<0.000000e+00> : vector<16xf32>
    %131 = vector.multi_reduction <add>, %130, %cst_39 [1] : vector<16x128xf32> to vector<16xf32>
    %132 = vector.shape_cast %131 : vector<16xf32> to vector<16x1xf32>
    %cst_40 = arith.constant 1.280000e+02 : f32
    %133 = vector.broadcast %cst_40 : f32 to vector<16x1xf32>
    %134 = arith.divf %132, %133 : vector<16x1xf32>
    %135 = arith.mulf %129, %129 : vector<16x1xf32>
    %136 = arith.subf %134, %135 : vector<16x1xf32>
    %137 = vector.broadcast %129 : vector<16x1xf32> to vector<16x128xf32>
    %138 = arith.subf %125, %137 : vector<16x128xf32>
    %cst_41 = arith.constant 9.99999974E-6 : f32
    %139 = vector.broadcast %cst_41 : f32 to vector<16x1xf32>
    %140 = arith.addf %136, %139 : vector<16x1xf32>
    %141 = math.rsqrt %140 : vector<16x1xf32>
    %142 = vector.broadcast %141 : vector<16x1xf32> to vector<16x128xf32>
    %143 = arith.mulf %138, %142 : vector<16x128xf32>
    %144 = vector.broadcast %114 : vector<1x128xf32> to vector<16x128xf32>
    %145 = arith.mulf %143, %144 : vector<16x128xf32>
    %146 = vector.broadcast %115 : vector<1x128xf32> to vector<16x128xf32>
    %147 = arith.addf %145, %146 : vector<16x128xf32>
    %148 = arith.truncf %147 : vector<16x128xf32> to vector<16x128xbf16>
    %149 = vector.extract_strided_slice %110 {offsets = [0, 128], sizes = [128, 128], strides = [1, 1]} : vector<128x384xbf16> to vector<128x128xbf16>
    %cst_42 = arith.constant dense<0.000000e+00> : vector<16x128xf32>
    %150 = tpu.matmul %148, %149, %cst_42 {dimension_numbers = #tpu.dot_dimension_numbers<[1], [0], [0], [1], [0, 0, 1, 1], [], []>} : vector<16x128xbf16>, vector<128x128xbf16>, vector<16x128xf32> -> vector<16x128xf32>
    %151 = vector.broadcast %116 : vector<1x128xf32> to vector<16x128xf32>
    %152 = arith.addf %150, %151 : vector<16x128xf32>
    %cst_43 = arith.constant 0.000000e+00 : f32
    %153 = vector.broadcast %cst_43 : f32 to vector<16x128xf32>
    %154 = arith.maximumf %152, %153 : vector<16x128xf32>
    %155 = arith.truncf %154 : vector<16x128xf32> to vector<16x128xbf16>
    %156 = vector.extract_strided_slice %110 {offsets = [0, 256], sizes = [128, 128], strides = [1, 1]} : vector<128x384xbf16> to vector<128x128xbf16>
    %cst_44 = arith.constant dense<0.000000e+00> : vector<16x128xf32>
    %157 = tpu.matmul %155, %156, %cst_44 {dimension_numbers = #tpu.dot_dimension_numbers<[1], [0], [0], [1], [0, 0, 1, 1], [], []>} : vector<16x128xbf16>, vector<128x128xbf16>, vector<16x128xf32> -> vector<16x128xf32>
    %158 = vector.broadcast %117 : vector<1x128xf32> to vector<16x128xf32>
    %159 = arith.addf %157, %158 : vector<16x128xf32>
    %160 = arith.addf %147, %159 : vector<16x128xf32>
    %cst_45 = arith.constant dense<0.000000e+00> : vector<16xf32>
    %161 = vector.multi_reduction <add>, %160, %cst_45 [1] : vector<16x128xf32> to vector<16xf32>
    %162 = vector.shape_cast %161 : vector<16xf32> to vector<16x1xf32>
    %cst_46 = arith.constant 1.280000e+02 : f32
    %163 = vector.broadcast %cst_46 : f32 to vector<16x1xf32>
    %164 = arith.divf %162, %163 : vector<16x1xf32>
    %165 = arith.mulf %160, %160 : vector<16x128xf32>
    %cst_47 = arith.constant dense<0.000000e+00> : vector<16xf32>
    %166 = vector.multi_reduction <add>, %165, %cst_47 [1] : vector<16x128xf32> to vector<16xf32>
    %167 = vector.shape_cast %166 : vector<16xf32> to vector<16x1xf32>
    %cst_48 = arith.constant 1.280000e+02 : f32
    %168 = vector.broadcast %cst_48 : f32 to vector<16x1xf32>
    %169 = arith.divf %167, %168 : vector<16x1xf32>
    %170 = arith.mulf %164, %164 : vector<16x1xf32>
    %171 = arith.subf %169, %170 : vector<16x1xf32>
    %172 = vector.broadcast %164 : vector<16x1xf32> to vector<16x128xf32>
    %173 = arith.subf %160, %172 : vector<16x128xf32>
    %cst_49 = arith.constant 9.99999974E-6 : f32
    %174 = vector.broadcast %cst_49 : f32 to vector<16x1xf32>
    %175 = arith.addf %171, %174 : vector<16x1xf32>
    %176 = math.rsqrt %175 : vector<16x1xf32>
    %177 = vector.broadcast %176 : vector<16x1xf32> to vector<16x128xf32>
    %178 = arith.mulf %173, %177 : vector<16x128xf32>
    %179 = vector.broadcast %118 : vector<1x128xf32> to vector<16x128xf32>
    %180 = arith.mulf %178, %179 : vector<16x128xf32>
    %181 = vector.broadcast %119 : vector<1x128xf32> to vector<16x128xf32>
    %182 = arith.addf %180, %181 : vector<16x128xf32>
    %c2 = arith.constant 2 : index
    %c0_50 = arith.constant 0 : index
    %c0_51 = arith.constant 0 : index
    %183 = vector.load %arg4[%c2, %c0_50, %c0_51] : memref<4x128x384xbf16, #tpu.memory_space<vmem>>, vector<1x128x384xbf16>
    %184 = vector.shape_cast %183 : vector<1x128x384xbf16> to vector<128x384xbf16>
    %c2_52 = arith.constant 2 : index
    %c0_53 = arith.constant 0 : index
    %c0_54 = arith.constant 0 : index
    %185 = vector.load %arg5[%c2_52, %c0_53, %c0_54] : memref<4x8x128xf32, #tpu.memory_space<vmem>>, vector<1x8x128xf32>
    %186 = vector.shape_cast %185 : vector<1x8x128xf32> to vector<8x128xf32>
    %187 = vector.extract_strided_slice %186 {offsets = [0, 0], sizes = [1, 128], strides = [1, 1]} : vector<8x128xf32> to vector<1x128xf32>
    %188 = vector.extract_strided_slice %186 {offsets = [1, 0], sizes = [1, 128], strides = [1, 1]} : vector<8x128xf32> to vector<1x128xf32>
    %189 = vector.extract_strided_slice %186 {offsets = [2, 0], sizes = [1, 128], strides = [1, 1]} : vector<8x128xf32> to vector<1x128xf32>
    %190 = vector.extract_strided_slice %186 {offsets = [3, 0], sizes = [1, 128], strides = [1, 1]} : vector<8x128xf32> to vector<1x128xf32>
    %191 = vector.extract_strided_slice %186 {offsets = [4, 0], sizes = [1, 128], strides = [1, 1]} : vector<8x128xf32> to vector<1x128xf32>
    %192 = vector.extract_strided_slice %186 {offsets = [5, 0], sizes = [1, 128], strides = [1, 1]} : vector<8x128xf32> to vector<1x128xf32>
    %193 = vector.extract_strided_slice %186 {offsets = [6, 0], sizes = [1, 128], strides = [1, 1]} : vector<8x128xf32> to vector<1x128xf32>
    %194 = arith.truncf %182 : vector<16x128xf32> to vector<16x128xbf16>
    %195 = vector.extract_strided_slice %184 {offsets = [0, 0], sizes = [128, 128], strides = [1, 1]} : vector<128x384xbf16> to vector<128x128xbf16>
    %cst_55 = arith.constant dense<0.000000e+00> : vector<16x128xf32>
    %196 = tpu.matmul %194, %195, %cst_55 {dimension_numbers = #tpu.dot_dimension_numbers<[1], [0], [0], [1], [0, 0, 1, 1], [], []>} : vector<16x128xbf16>, vector<128x128xbf16>, vector<16x128xf32> -> vector<16x128xf32>
    %197 = vector.broadcast %187 : vector<1x128xf32> to vector<16x128xf32>
    %198 = arith.addf %196, %197 : vector<16x128xf32>
    %199 = arith.addf %182, %198 : vector<16x128xf32>
    %cst_56 = arith.constant dense<0.000000e+00> : vector<16xf32>
    %200 = vector.multi_reduction <add>, %199, %cst_56 [1] : vector<16x128xf32> to vector<16xf32>
    %201 = vector.shape_cast %200 : vector<16xf32> to vector<16x1xf32>
    %cst_57 = arith.constant 1.280000e+02 : f32
    %202 = vector.broadcast %cst_57 : f32 to vector<16x1xf32>
    %203 = arith.divf %201, %202 : vector<16x1xf32>
    %204 = arith.mulf %199, %199 : vector<16x128xf32>
    %cst_58 = arith.constant dense<0.000000e+00> : vector<16xf32>
    %205 = vector.multi_reduction <add>, %204, %cst_58 [1] : vector<16x128xf32> to vector<16xf32>
    %206 = vector.shape_cast %205 : vector<16xf32> to vector<16x1xf32>
    %cst_59 = arith.constant 1.280000e+02 : f32
    %207 = vector.broadcast %cst_59 : f32 to vector<16x1xf32>
    %208 = arith.divf %206, %207 : vector<16x1xf32>
    %209 = arith.mulf %203, %203 : vector<16x1xf32>
    %210 = arith.subf %208, %209 : vector<16x1xf32>
    %211 = vector.broadcast %203 : vector<16x1xf32> to vector<16x128xf32>
    %212 = arith.subf %199, %211 : vector<16x128xf32>
    %cst_60 = arith.constant 9.99999974E-6 : f32
    %213 = vector.broadcast %cst_60 : f32 to vector<16x1xf32>
    %214 = arith.addf %210, %213 : vector<16x1xf32>
    %215 = math.rsqrt %214 : vector<16x1xf32>
    %216 = vector.broadcast %215 : vector<16x1xf32> to vector<16x128xf32>
    %217 = arith.mulf %212, %216 : vector<16x128xf32>
    %218 = vector.broadcast %188 : vector<1x128xf32> to vector<16x128xf32>
    %219 = arith.mulf %217, %218 : vector<16x128xf32>
    %220 = vector.broadcast %189 : vector<1x128xf32> to vector<16x128xf32>
    %221 = arith.addf %219, %220 : vector<16x128xf32>
    %222 = arith.truncf %221 : vector<16x128xf32> to vector<16x128xbf16>
    %223 = vector.extract_strided_slice %184 {offsets = [0, 128], sizes = [128, 128], strides = [1, 1]} : vector<128x384xbf16> to vector<128x128xbf16>
    %cst_61 = arith.constant dense<0.000000e+00> : vector<16x128xf32>
    %224 = tpu.matmul %222, %223, %cst_61 {dimension_numbers = #tpu.dot_dimension_numbers<[1], [0], [0], [1], [0, 0, 1, 1], [], []>} : vector<16x128xbf16>, vector<128x128xbf16>, vector<16x128xf32> -> vector<16x128xf32>
    %225 = vector.broadcast %190 : vector<1x128xf32> to vector<16x128xf32>
    %226 = arith.addf %224, %225 : vector<16x128xf32>
    %cst_62 = arith.constant 0.000000e+00 : f32
    %227 = vector.broadcast %cst_62 : f32 to vector<16x128xf32>
    %228 = arith.maximumf %226, %227 : vector<16x128xf32>
    %229 = arith.truncf %228 : vector<16x128xf32> to vector<16x128xbf16>
    %230 = vector.extract_strided_slice %184 {offsets = [0, 256], sizes = [128, 128], strides = [1, 1]} : vector<128x384xbf16> to vector<128x128xbf16>
    %cst_63 = arith.constant dense<0.000000e+00> : vector<16x128xf32>
    %231 = tpu.matmul %229, %230, %cst_63 {dimension_numbers = #tpu.dot_dimension_numbers<[1], [0], [0], [1], [0, 0, 1, 1], [], []>} : vector<16x128xbf16>, vector<128x128xbf16>, vector<16x128xf32> -> vector<16x128xf32>
    %232 = vector.broadcast %191 : vector<1x128xf32> to vector<16x128xf32>
    %233 = arith.addf %231, %232 : vector<16x128xf32>
    %234 = arith.addf %221, %233 : vector<16x128xf32>
    %cst_64 = arith.constant dense<0.000000e+00> : vector<16xf32>
    %235 = vector.multi_reduction <add>, %234, %cst_64 [1] : vector<16x128xf32> to vector<16xf32>
    %236 = vector.shape_cast %235 : vector<16xf32> to vector<16x1xf32>
    %cst_65 = arith.constant 1.280000e+02 : f32
    %237 = vector.broadcast %cst_65 : f32 to vector<16x1xf32>
    %238 = arith.divf %236, %237 : vector<16x1xf32>
    %239 = arith.mulf %234, %234 : vector<16x128xf32>
    %cst_66 = arith.constant dense<0.000000e+00> : vector<16xf32>
    %240 = vector.multi_reduction <add>, %239, %cst_66 [1] : vector<16x128xf32> to vector<16xf32>
    %241 = vector.shape_cast %240 : vector<16xf32> to vector<16x1xf32>
    %cst_67 = arith.constant 1.280000e+02 : f32
    %242 = vector.broadcast %cst_67 : f32 to vector<16x1xf32>
    %243 = arith.divf %241, %242 : vector<16x1xf32>
    %244 = arith.mulf %238, %238 : vector<16x1xf32>
    %245 = arith.subf %243, %244 : vector<16x1xf32>
    %246 = vector.broadcast %238 : vector<16x1xf32> to vector<16x128xf32>
    %247 = arith.subf %234, %246 : vector<16x128xf32>
    %cst_68 = arith.constant 9.99999974E-6 : f32
    %248 = vector.broadcast %cst_68 : f32 to vector<16x1xf32>
    %249 = arith.addf %245, %248 : vector<16x1xf32>
    %250 = math.rsqrt %249 : vector<16x1xf32>
    %251 = vector.broadcast %250 : vector<16x1xf32> to vector<16x128xf32>
    %252 = arith.mulf %247, %251 : vector<16x128xf32>
    %253 = vector.broadcast %192 : vector<1x128xf32> to vector<16x128xf32>
    %254 = arith.mulf %252, %253 : vector<16x128xf32>
    %255 = vector.broadcast %193 : vector<1x128xf32> to vector<16x128xf32>
    %256 = arith.addf %254, %255 : vector<16x128xf32>
    %c3 = arith.constant 3 : index
    %c0_69 = arith.constant 0 : index
    %c0_70 = arith.constant 0 : index
    %257 = vector.load %arg4[%c3, %c0_69, %c0_70] : memref<4x128x384xbf16, #tpu.memory_space<vmem>>, vector<1x128x384xbf16>
    %258 = vector.shape_cast %257 : vector<1x128x384xbf16> to vector<128x384xbf16>
    %c3_71 = arith.constant 3 : index
    %c0_72 = arith.constant 0 : index
    %c0_73 = arith.constant 0 : index
    %259 = vector.load %arg5[%c3_71, %c0_72, %c0_73] : memref<4x8x128xf32, #tpu.memory_space<vmem>>, vector<1x8x128xf32>
    %260 = vector.shape_cast %259 : vector<1x8x128xf32> to vector<8x128xf32>
    %261 = vector.extract_strided_slice %260 {offsets = [0, 0], sizes = [1, 128], strides = [1, 1]} : vector<8x128xf32> to vector<1x128xf32>
    %262 = vector.extract_strided_slice %260 {offsets = [1, 0], sizes = [1, 128], strides = [1, 1]} : vector<8x128xf32> to vector<1x128xf32>
    %263 = vector.extract_strided_slice %260 {offsets = [2, 0], sizes = [1, 128], strides = [1, 1]} : vector<8x128xf32> to vector<1x128xf32>
    %264 = vector.extract_strided_slice %260 {offsets = [3, 0], sizes = [1, 128], strides = [1, 1]} : vector<8x128xf32> to vector<1x128xf32>
    %265 = vector.extract_strided_slice %260 {offsets = [4, 0], sizes = [1, 128], strides = [1, 1]} : vector<8x128xf32> to vector<1x128xf32>
    %266 = vector.extract_strided_slice %260 {offsets = [5, 0], sizes = [1, 128], strides = [1, 1]} : vector<8x128xf32> to vector<1x128xf32>
    %267 = vector.extract_strided_slice %260 {offsets = [6, 0], sizes = [1, 128], strides = [1, 1]} : vector<8x128xf32> to vector<1x128xf32>
    %268 = arith.truncf %256 : vector<16x128xf32> to vector<16x128xbf16>
    %269 = vector.extract_strided_slice %258 {offsets = [0, 0], sizes = [128, 128], strides = [1, 1]} : vector<128x384xbf16> to vector<128x128xbf16>
    %cst_74 = arith.constant dense<0.000000e+00> : vector<16x128xf32>
    %270 = tpu.matmul %268, %269, %cst_74 {dimension_numbers = #tpu.dot_dimension_numbers<[1], [0], [0], [1], [0, 0, 1, 1], [], []>} : vector<16x128xbf16>, vector<128x128xbf16>, vector<16x128xf32> -> vector<16x128xf32>
    %271 = vector.broadcast %261 : vector<1x128xf32> to vector<16x128xf32>
    %272 = arith.addf %270, %271 : vector<16x128xf32>
    %273 = arith.addf %256, %272 : vector<16x128xf32>
    %cst_75 = arith.constant dense<0.000000e+00> : vector<16xf32>
    %274 = vector.multi_reduction <add>, %273, %cst_75 [1] : vector<16x128xf32> to vector<16xf32>
    %275 = vector.shape_cast %274 : vector<16xf32> to vector<16x1xf32>
    %cst_76 = arith.constant 1.280000e+02 : f32
    %276 = vector.broadcast %cst_76 : f32 to vector<16x1xf32>
    %277 = arith.divf %275, %276 : vector<16x1xf32>
    %278 = arith.mulf %273, %273 : vector<16x128xf32>
    %cst_77 = arith.constant dense<0.000000e+00> : vector<16xf32>
    %279 = vector.multi_reduction <add>, %278, %cst_77 [1] : vector<16x128xf32> to vector<16xf32>
    %280 = vector.shape_cast %279 : vector<16xf32> to vector<16x1xf32>
    %cst_78 = arith.constant 1.280000e+02 : f32
    %281 = vector.broadcast %cst_78 : f32 to vector<16x1xf32>
    %282 = arith.divf %280, %281 : vector<16x1xf32>
    %283 = arith.mulf %277, %277 : vector<16x1xf32>
    %284 = arith.subf %282, %283 : vector<16x1xf32>
    %285 = vector.broadcast %277 : vector<16x1xf32> to vector<16x128xf32>
    %286 = arith.subf %273, %285 : vector<16x128xf32>
    %cst_79 = arith.constant 9.99999974E-6 : f32
    %287 = vector.broadcast %cst_79 : f32 to vector<16x1xf32>
    %288 = arith.addf %284, %287 : vector<16x1xf32>
    %289 = math.rsqrt %288 : vector<16x1xf32>
    %290 = vector.broadcast %289 : vector<16x1xf32> to vector<16x128xf32>
    %291 = arith.mulf %286, %290 : vector<16x128xf32>
    %292 = vector.broadcast %262 : vector<1x128xf32> to vector<16x128xf32>
    %293 = arith.mulf %291, %292 : vector<16x128xf32>
    %294 = vector.broadcast %263 : vector<1x128xf32> to vector<16x128xf32>
    %295 = arith.addf %293, %294 : vector<16x128xf32>
    %296 = arith.truncf %295 : vector<16x128xf32> to vector<16x128xbf16>
    %297 = vector.extract_strided_slice %258 {offsets = [0, 128], sizes = [128, 128], strides = [1, 1]} : vector<128x384xbf16> to vector<128x128xbf16>
    %cst_80 = arith.constant dense<0.000000e+00> : vector<16x128xf32>
    %298 = tpu.matmul %296, %297, %cst_80 {dimension_numbers = #tpu.dot_dimension_numbers<[1], [0], [0], [1], [0, 0, 1, 1], [], []>} : vector<16x128xbf16>, vector<128x128xbf16>, vector<16x128xf32> -> vector<16x128xf32>
    %299 = vector.broadcast %264 : vector<1x128xf32> to vector<16x128xf32>
    %300 = arith.addf %298, %299 : vector<16x128xf32>
    %cst_81 = arith.constant 0.000000e+00 : f32
    %301 = vector.broadcast %cst_81 : f32 to vector<16x128xf32>
    %302 = arith.maximumf %300, %301 : vector<16x128xf32>
    %303 = arith.truncf %302 : vector<16x128xf32> to vector<16x128xbf16>
    %304 = vector.extract_strided_slice %258 {offsets = [0, 256], sizes = [128, 128], strides = [1, 1]} : vector<128x384xbf16> to vector<128x128xbf16>
    %cst_82 = arith.constant dense<0.000000e+00> : vector<16x128xf32>
    %305 = tpu.matmul %303, %304, %cst_82 {dimension_numbers = #tpu.dot_dimension_numbers<[1], [0], [0], [1], [0, 0, 1, 1], [], []>} : vector<16x128xbf16>, vector<128x128xbf16>, vector<16x128xf32> -> vector<16x128xf32>
    %306 = vector.broadcast %265 : vector<1x128xf32> to vector<16x128xf32>
    %307 = arith.addf %305, %306 : vector<16x128xf32>
    %308 = arith.addf %295, %307 : vector<16x128xf32>
    %cst_83 = arith.constant dense<0.000000e+00> : vector<16xf32>
    %309 = vector.multi_reduction <add>, %308, %cst_83 [1] : vector<16x128xf32> to vector<16xf32>
    %310 = vector.shape_cast %309 : vector<16xf32> to vector<16x1xf32>
    %cst_84 = arith.constant 1.280000e+02 : f32
    %311 = vector.broadcast %cst_84 : f32 to vector<16x1xf32>
    %312 = arith.divf %310, %311 : vector<16x1xf32>
    %313 = arith.mulf %308, %308 : vector<16x128xf32>
    %cst_85 = arith.constant dense<0.000000e+00> : vector<16xf32>
    %314 = vector.multi_reduction <add>, %313, %cst_85 [1] : vector<16x128xf32> to vector<16xf32>
    %315 = vector.shape_cast %314 : vector<16xf32> to vector<16x1xf32>
    %cst_86 = arith.constant 1.280000e+02 : f32
    %316 = vector.broadcast %cst_86 : f32 to vector<16x1xf32>
    %317 = arith.divf %315, %316 : vector<16x1xf32>
    %318 = arith.mulf %312, %312 : vector<16x1xf32>
    %319 = arith.subf %317, %318 : vector<16x1xf32>
    %320 = vector.broadcast %312 : vector<16x1xf32> to vector<16x128xf32>
    %321 = arith.subf %308, %320 : vector<16x128xf32>
    %cst_87 = arith.constant 9.99999974E-6 : f32
    %322 = vector.broadcast %cst_87 : f32 to vector<16x1xf32>
    %323 = arith.addf %319, %322 : vector<16x1xf32>
    %324 = math.rsqrt %323 : vector<16x1xf32>
    %325 = vector.broadcast %324 : vector<16x1xf32> to vector<16x128xf32>
    %326 = arith.mulf %321, %325 : vector<16x128xf32>
    %327 = vector.broadcast %266 : vector<1x128xf32> to vector<16x128xf32>
    %328 = arith.mulf %326, %327 : vector<16x128xf32>
    %329 = vector.broadcast %267 : vector<1x128xf32> to vector<16x128xf32>
    %330 = arith.addf %328, %329 : vector<16x128xf32>
    %331 = arith.addf %34, %330 : vector<16x128xf32>
    %332 = arith.truncf %331 : vector<16x128xf32> to vector<16x128xbf16>
    %c1_88 = arith.constant 1 : index
    %c0_89 = arith.constant 0 : index
    %c0_90 = arith.constant 0 : index
    %333 = vector.load %arg2[%c1_88, %c0_89, %c0_90] : memref<3x128x128xbf16, #tpu.memory_space<vmem>>, vector<1x128x128xbf16>
    %334 = vector.shape_cast %333 : vector<1x128x128xbf16> to vector<128x128xbf16>
    %cst_91 = arith.constant dense<0.000000e+00> : vector<16x128xf32>
    %335 = tpu.matmul %332, %334, %cst_91 {dimension_numbers = #tpu.dot_dimension_numbers<[1], [0], [0], [1], [0, 0, 1, 1], [], []>} : vector<16x128xbf16>, vector<128x128xbf16>, vector<16x128xf32> -> vector<16x128xf32>
    %336 = vector.broadcast %4 : vector<1x128xf32> to vector<16x128xf32>
    %337 = arith.addf %335, %336 : vector<16x128xf32>
    %cst_92 = arith.constant 0.000000e+00 : f32
    %338 = vector.broadcast %cst_92 : f32 to vector<16x128xf32>
    %339 = arith.maximumf %337, %338 : vector<16x128xf32>
    %340 = arith.truncf %339 : vector<16x128xf32> to vector<16x128xbf16>
    %c2_93 = arith.constant 2 : index
    %c0_94 = arith.constant 0 : index
    %c0_95 = arith.constant 0 : index
    %341 = vector.load %arg2[%c2_93, %c0_94, %c0_95] : memref<3x128x128xbf16, #tpu.memory_space<vmem>>, vector<1x128x128xbf16>
    %342 = vector.shape_cast %341 : vector<1x128x128xbf16> to vector<128x128xbf16>
    %cst_96 = arith.constant dense<0.000000e+00> : vector<16x128xf32>
    %343 = tpu.matmul %340, %342, %cst_96 {dimension_numbers = #tpu.dot_dimension_numbers<[1], [0], [0], [1], [0, 0, 1, 1], [], []>} : vector<16x128xbf16>, vector<128x128xbf16>, vector<16x128xf32> -> vector<16x128xf32>
    %344 = vector.broadcast %5 : vector<1x128xf32> to vector<16x128xf32>
    %345 = arith.addf %343, %344 : vector<16x128xf32>
    %c0_97 = arith.constant 0 : index
    %c0_98 = arith.constant 0 : index
    %346 = vector.load %arg6[%c0_97, %c0_98] : memref<16x128xf32, #tpu.memory_space<vmem>>, vector<16x128xf32>
    tpu.vector_store %arg6[%c0_97, %c0_98], %345 {strides = array<i32>} : memref<16x128xf32, #tpu.memory_space<vmem>>, vector<16x128xf32>,
    return
  }
  func.func @transform_0(%arg0: i32) -> (i32, i32) {
    %c0_i32 = arith.constant 0 : i32
    %c0_i32_0 = arith.constant 0 : i32
    return %arg0, %c0_i32 : i32, i32
  }
  func.func @transform_1(%arg0: i32) -> (i32, i32, i32) {
    %c0_i32 = arith.constant 0 : i32
    %c0_i32_0 = arith.constant 0 : i32
    %c0_i32_1 = arith.constant 0 : i32
    %c0_i32_2 = arith.constant 0 : i32
    return %c0_i32, %c0_i32_0, %c0_i32_1 : i32, i32, i32
  }
  func.func @transform_2(%arg0: i32) -> (i32, i32) {
    %c0_i32 = arith.constant 0 : i32
    %c0_i32_0 = arith.constant 0 : i32
    %c0_i32_1 = arith.constant 0 : i32
    return %c0_i32, %c0_i32_0 : i32, i32
  }
  func.func @transform_3(%arg0: i32) -> (i32, i32, i32) {
    %c0_i32 = arith.constant 0 : i32
    %c0_i32_0 = arith.constant 0 : i32
    %c0_i32_1 = arith.constant 0 : i32
    %c0_i32_2 = arith.constant 0 : i32
    return %c0_i32, %c0_i32_0, %c0_i32_1 : i32, i32, i32
  }
  func.func @transform_4(%arg0: i32) -> (i32, i32, i32) {
    %c0_i32 = arith.constant 0 : i32
    %c0_i32_0 = arith.constant 0 : i32
    %c0_i32_1 = arith.constant 0 : i32
    %c0_i32_2 = arith.constant 0 : i32
    return %c0_i32, %c0_i32_0, %c0_i32_1 : i32, i32, i32
  }
  func.func @transform_5(%arg0: i32) -> (i32, i32) {
    %c0_i32 = arith.constant 0 : i32
    %c0_i32_0 = arith.constant 0 : i32
    return %arg0, %c0_i32 : i32, i32
  }
}

</mosaic_0001>

<llo_original>
// kernel: tpu_custom_call.1
$region0: #{tpu_custom_call.1}
  #allocation0 [shape = 'u32[]', space=smem, size = 0x4, offset = 0x4, fixed_abs, tag = 'smem constant byte address 0x4 - core index']
  #allocation1 [shape = 'u32[144,128]{1,0:T(1,128)}', space=vmem, size = 0x12000, scoped, tag = 'internal scratch']
  %s0 = inlined_call_operand.hbm [shape: f32[16,128], index: 0, kind: input, shape index: {}]
  %s1 = inlined_call_operand.hbm [shape: bf16[3,128,128], index: 1, kind: input, shape index: {}]
  %s2 = inlined_call_operand.hbm [shape: f32[8,128], index: 2, kind: input, shape index: {}]
  %s3 = inlined_call_operand.hbm [shape: bf16[4,128,384], index: 3, kind: input, shape index: {}]
  %s4 = inlined_call_operand.hbm [shape: f32[4,8,128], index: 4, kind: input, shape index: {}]
  %s5 = inlined_call_operand.hbm [shape: f32[16,128], index: 5, kind: output, shape index: {}]
  %s6 = sld [smem:[#allocation0]]
  $region50: #{tpu_custom_call.1} parent=0
    _
  %s8 = ssub.s32 1, %s6
  %s9 = scalar_select 0, %s8, %s6
  $region1: #{tpu_custom_call.1} parent=0
    #allocation2 [shape = 'u8[8192]{0}', space=vmem, size = 0x2000, scoped, tag = 'input window, operand 0, single buffered']
    #allocation3 [shape = 's32[1]{0}', space=sflag, size = 0x4, scoped, tag = 'scoped memory for tpu_custom_call.1']
    #allocation4 [shape = 's32[1]{0}', space=sflag, size = 0x4, scoped, tag = 'scoped memory for tpu_custom_call.1']
    #allocation5 [shape = 'u8[98304]{0}', space=vmem, size = 0x18000, scoped, tag = 'input window, operand 1, single buffered']
    #allocation6 [shape = 's32[1]{0}', space=sflag, size = 0x4, scoped, tag = 'scoped memory for tpu_custom_call.1']
    #allocation7 [shape = 'u8[4096]{0}', space=vmem, size = 0x1000, scoped, tag = 'input window, operand 2, single buffered']
    #allocation8 [shape = 'u8[393216]{0}', space=vmem, size = 0x60000, scoped, tag = 'input window, operand 3, single buffered']
    #allocation9 [shape = 's32[1]{0}', space=sflag, size = 0x4, scoped, tag = 'scoped memory for tpu_custom_call.1']
    #allocation10 [shape = 'u8[16384]{0}', space=vmem, size = 0x4000, scoped, tag = 'input window, operand 4, single buffered']
    #allocation11 [shape = 'u8[8192]{0}', space=vmem, size = 0x2000, scoped, tag = 'output window, operand 0, single buffered']
    %10 = vsyncpa [#allocation3], 0
    %11 = vsyncpa [#allocation6], 0
    %12 = vsyncpa [#allocation9], 0
    %13 = vsyncpa [#allocation4], 0
    // Predicated region
    $region2: #{tpu_custom_call.1} parent=1 // pred_check
      _
    $region3: #{tpu_custom_call.1} parent=1 // pred_check_branch
      %15 = sbr.rel (0) target = $region5
    $region4: #{tpu_custom_call.1} parent=1 // pred_region
      %s17 = ssub.s32 256, 256
      %18 = vsyncadd [#allocation3], %s17
      %s19 = sshll.u32 [#allocation2], 4
      %s20 = int_to_ptr.vmem [resolvable:$true] %s19
      %25 = dma.hbm_to_vmem [thread:$0]  %s0, 256, %s20, [#allocation3], 128, 128, 8
    $region5: #{tpu_custom_call.1} parent=1 // pred_fallthru
      _
    // Predicated region
    $region6: #{tpu_custom_call.1} parent=1 // pred_check
      _
    $region7: #{tpu_custom_call.1} parent=1 // pred_check_branch
      %27 = sbr.rel (0) target = $region9
    $region8: #{tpu_custom_call.1} parent=1 // pred_region
      %s29 = ssub.s32 3072, 3072
      %30 = vsyncadd [#allocation6], %s29
      %s31 = sshll.u32 [#allocation5], 4
      %s32 = int_to_ptr.vmem [resolvable:$true] %s31
      %37 = dma.hbm_to_vmem [thread:$0]  %s1, 3072, %s32, [#allocation6], 64, 64, 4
    $region9: #{tpu_custom_call.1} parent=1 // pred_fallthru
      _
    // Predicated region
    $region10: #{tpu_custom_call.1} parent=1 // pred_check
      _
    $region11: #{tpu_custom_call.1} parent=1 // pred_check_branch
      %39 = sbr.rel (0) target = $region13
    $region12: #{tpu_custom_call.1} parent=1 // pred_region
      %s41 = ssub.s32 128, 128
      %42 = vsyncadd [#allocation6], %s41
      %s44 = sshll.u32 [#allocation7], 4
      %s45 = int_to_ptr.vmem [resolvable:$true] %s44
      %47 = dma.hbm_to_vmem [thread:$0]  %s2, 128, %s45, [#allocation6]
    $region13: #{tpu_custom_call.1} parent=1 // pred_fallthru
      _
    // Predicated region
    $region14: #{tpu_custom_call.1} parent=1 // pred_check
      _
    $region15: #{tpu_custom_call.1} parent=1 // pred_check_branch
      %49 = sbr.rel (0) target = $region17
    $region16: #{tpu_custom_call.1} parent=1 // pred_region
      %s51 = ssub.s32 12288, 12288
      %52 = vsyncadd [#allocation9], %s51
      %s53 = sshll.u32 [#allocation8], 4
      %s54 = int_to_ptr.vmem [resolvable:$true] %s53
      %59 = dma.hbm_to_vmem [thread:$0]  %s3, 12288, %s54, [#allocation9], 192, 192, 12
    $region17: #{tpu_custom_call.1} parent=1 // pred_fallthru
      _
    // Predicated region
    $region18: #{tpu_custom_call.1} parent=1 // pred_check
      _
    $region19: #{tpu_custom_call.1} parent=1 // pred_check_branch
      %61 = sbr.rel (0) target = $region21
    $region20: #{tpu_custom_call.1} parent=1 // pred_region
      %s63 = ssub.s32 512, 512
      %64 = vsyncadd [#allocation9], %s63
      %s65 = sshll.u32 [#allocation10], 4
      %s66 = int_to_ptr.vmem [resolvable:$true] %s65
      %71 = dma.hbm_to_vmem [thread:$0]  %s4, 512, %s66, [#allocation9], 128, 128, 8
    $region21: #{tpu_custom_call.1} parent=1 // pred_fallthru
      _
    // Predicated region
    $region22: #{tpu_custom_call.1} parent=1 // pred_check
      _
    $region23: #{tpu_custom_call.1} parent=1 // pred_check_branch
      %73 = sbr.rel (0) target = $region25
    $region24: #{tpu_custom_call.1} parent=1 // pred_region
      %74 = dma.done [#allocation3], 256
    $region25: #{tpu_custom_call.1} parent=1 // pred_fallthru
      _
    // Predicated region
    $region26: #{tpu_custom_call.1} parent=1 // pred_check
      _
    $region27: #{tpu_custom_call.1} parent=1 // pred_check_branch
      %76 = sbr.rel (0) target = $region29
    $region28: #{tpu_custom_call.1} parent=1 // pred_region
      %77 = dma.done [#allocation6], 3072
    $region29: #{tpu_custom_call.1} parent=1 // pred_fallthru
      _
    // Predicated region
    $region30: #{tpu_custom_call.1} parent=1 // pred_check
      _
    $region31: #{tpu_custom_call.1} parent=1 // pred_check_branch
      %79 = sbr.rel (0) target = $region33
    $region32: #{tpu_custom_call.1} parent=1 // pred_region
      %80 = dma.done [#allocation6], 128
    $region33: #{tpu_custom_call.1} parent=1 // pred_fallthru
      _
    // Predicated region
    $region34: #{tpu_custom_call.1} parent=1 // pred_check
      _
    $region35: #{tpu_custom_call.1} parent=1 // pred_check_branch
      %82 = sbr.rel (0) target = $region37
    $region36: #{tpu_custom_call.1} parent=1 // pred_region
      %83 = dma.done [#allocation9], 12288
    $region37: #{tpu_custom_call.1} parent=1 // pred_fallthru
      _
    // Predicated region
    $region38: #{tpu_custom_call.1} parent=1 // pred_check
      _
    $region39: #{tpu_custom_call.1} parent=1 // pred_check_branch
      %85 = sbr.rel (0) target = $region41
    $region40: #{tpu_custom_call.1} parent=1 // pred_region
      %86 = dma.done [#allocation9], 512
    $region41: #{tpu_custom_call.1} parent=1 // pred_fallthru
      _
    %v88 = vld [vmem:[#allocation7] sm:$0xff]
    %v89 = vld [vmem:[#allocation2] sm:$0xff]
    %v90 = vld [vmem:[#allocation2 + $0x8] sm:$0xff]
    %v91 = vpack.c.bf16 %v90, %v89
    %v92 = vld [vmem:[#allocation5] sm:$0xf]
    %v93 = vld [vmem:[#allocation5 + $0x4] sm:$0xf]
    %v94 = vld [vmem:[#allocation5 + $0x8] sm:$0xf]
    %v95 = vld [vmem:[#allocation5 + $0xc] sm:$0xf]
    %v96 = vld [vmem:[#allocation5 + $0x10] sm:$0xf]
    %v97 = vld [vmem:[#allocation5 + $0x14] sm:$0xf]
    %v98 = vld [vmem:[#allocation5 + $0x18] sm:$0xf]
    %v99 = vld [vmem:[#allocation5 + $0x1c] sm:$0xf]
    %v100 = vld [vmem:[#allocation5 + $0x20] sm:$0xf]
    %v101 = vld [vmem:[#allocation5 + $0x24] sm:$0xf]
    %v102 = vld [vmem:[#allocation5 + $0x28] sm:$0xf]
    %v103 = vld [vmem:[#allocation5 + $0x2c] sm:$0xf]
    %v104 = vld [vmem:[#allocation5 + $0x30] sm:$0xf]
    %v105 = vld [vmem:[#allocation5 + $0x34] sm:$0xf]
    %v106 = vld [vmem:[#allocation5 + $0x38] sm:$0xf]
    %v107 = vld [vmem:[#allocation5 + $0x3c] sm:$0xf]
    %v108 = vlaneseq
    %v109 = vshrl.u32 %v108, 7
    %v110 = vsub.s32 0, %v109
    %v111 = vrot.slane %v88, %v110
    %v128 = vunpack.c.l.b16 %v92
    %v129 = vunpack.c.l.b16 %v93
    %v130 = vunpack.c.l.b16 %v94
    %v131 = vunpack.c.l.b16 %v95
    %v132 = vunpack.c.l.b16 %v96
    %v133 = vunpack.c.l.b16 %v97
    %v134 = vunpack.c.l.b16 %v98
    %v135 = vunpack.c.l.b16 %v99
    %v136 = vunpack.c.l.b16 %v100
    %v137 = vunpack.c.l.b16 %v101
    %v138 = vunpack.c.l.b16 %v102
    %v139 = vunpack.c.l.b16 %v103
    %v140 = vunpack.c.l.b16 %v104
    %v141 = vunpack.c.l.b16 %v105
    %v142 = vunpack.c.l.b16 %v106
    %v143 = vunpack.c.l.b16 %v107
    %v144 = vpack.c.b16 %v129, %v128
    %v145 = vpack.c.b16 %v131, %v130
    %v146 = vpack.c.b16 %v133, %v132
    %v147 = vpack.c.b16 %v135, %v134
    %v148 = vpack.c.b16 %v137, %v136
    %v149 = vpack.c.b16 %v139, %v138
    %v150 = vpack.c.b16 %v141, %v140
    %v151 = vpack.c.b16 %v143, %v142
    %160 = vmatprep.subr.bf16.mxu0 0
    %161 = vmatpush1.bf16.msra.mxu0 %v151
    %162 = vmatprep.subr.bf16.mxu0 0
    %163 = vmatpush1.bf16.msra.mxu0 %v150
    %164 = vmatprep.subr.bf16.mxu0 0
    %165 = vmatpush1.bf16.msra.mxu0 %v149
    %166 = vmatprep.subr.bf16.mxu0 0
    %167 = vmatpush1.bf16.msra.mxu0 %v148
    %168 = vmatprep.subr.bf16.mxu0 0
    %169 = vmatpush1.bf16.msra.mxu0 %v147
    %170 = vmatprep.subr.bf16.mxu0 0
    %171 = vmatpush1.bf16.msra.mxu0 %v146
    %172 = vmatprep.subr.bf16.mxu0 0
    %173 = vmatpush1.bf16.msra.mxu0 %v145
    %174 = vmatprep.subr.bf16.mxu0 0
    %175 = vmatpush1.bf16.msra.mxu0 %v144
    %176 = vmatprep.subr.bf16.mxu0 0
    %177 = vmatpush2.bf16.msra.mxu0 0
    %178 = vmatprep.subr.bf16.mxu0 0
    %179 = vmatpush2.bf16.msra.mxu0 0
    %180 = vmatprep.subr.bf16.mxu0 0
    %181 = vmatpush2.bf16.msra.mxu0 0
    %182 = vmatprep.subr.bf16.mxu0 0
    %183 = vmatpush2.bf16.msra.mxu0 0
    %184 = vmatprep.subr.bf16.mxu0 0
    %185 = vmatpush2.bf16.msra.mxu0 0
    %186 = vmatprep.subr.bf16.mxu0 0
    %187 = vmatpush2.bf16.msra.mxu0 0
    %188 = vmatprep.subr.bf16.mxu0 0
    %189 = vmatpush2.bf16.msra.mxu0 0
    %190 = vmatprep.subr.bf16.mxu0 0
    %191 = vmatpush2.bf16.msra.mxu0 0
    %192 = vmatprep.mubr.bf16.mxu0 0
    %193 = vmatmul.mubr.bf16.gmra.mxu0 %v91
    %v194 = vpop.f32.mrf.mxu0
    %v195 = vadd.f32 %v111, %v194
    %v196 = vpop.f32.mrf.mxu0
    %v197 = vpop.f32.mrf.mxu0
    %v198 = vadd.f32 %v111, %v197
    %v199 = vpop.f32.mrf.mxu0
    %200 = vdwg.mxu0
    %201 = vadd.xlane.f32.xlu0 %v195
    %v202 = vpop.xlane.xlu0 %201
    %203 = vadd.xlane.f32.xlu0 %v198
    %v204 = vpop.xlane.xlu0 %203
    %v205 = vrcp.pop 128.0
    %v206 = vmul.f32 %v202, %v205
    %v207 = vmul.f32 %v204, %v205
    %v208 = vmul.f32 %v195, %v195
    %v209 = vmul.f32 %v198, %v198
    %210 = vadd.xlane.f32.xlu0 %v208
    %v211 = vpop.xlane.xlu0 %210
    %212 = vadd.xlane.f32.xlu0 %v209
    %v213 = vpop.xlane.xlu0 %212
    %v214 = vmul.f32 %v211, %v205
    %v215 = vmul.f32 %v213, %v205
    %v216 = vmul.f32 %v206, %v206
    %v217 = vmul.f32 %v207, %v207
    %v218 = vsub.f32 %v214, %v216
    %v219 = vsub.f32 %v215, %v217
    %v220 = vsub.f32 %v195, %v206
    %v221 = vsub.f32 %v198, %v207
    %v222 = vadd.f32 %v218, 1e-05
    %v223 = vadd.f32 %v219, 1e-05
    %v224 = vrsqrt.pop %v222
    %v225 = vrsqrt.pop %v223
    %v226 = vmul.f32 %v220, %v224
    %v227 = vmul.f32 %v221, %v225
    %v228 = vlaneseq
    %v229 = vshrl.u32 %v228, 7
    %v230 = vsub.s32 1, %v229
    %v231 = vrot.slane %v88, %v230
    %v232 = vmul.f32 %v226, %v231
    %v233 = vmul.f32 %v227, %v231
    %v234 = vlaneseq
    %v235 = vshrl.u32 %v234, 7
    %v236 = vsub.s32 2, %v235
    %v237 = vrot.slane %v88, %v236
    %v238 = vadd.f32 %v232, %v237
    %v239 = vadd.f32 %v233, %v237
    %v240 = vld [vmem:[#allocation8] sm:$0xff]
    %v241 = vld [vmem:[#allocation8 + $0x8] sm:$0xf]
    %v242 = vld [vmem:[#allocation8 + $0xc] sm:$0xff]
    %v243 = vld [vmem:[#allocation8 + $0x14] sm:$0xf]
    %v244 = vld [vmem:[#allocation8 + $0x18] sm:$0xff]
    %v245 = vld [vmem:[#allocation8 + $0x20] sm:$0xf]
    %v246 = vld [vmem:[#allocation8 + $0x24] sm:$0xff]
    %v247 = vld [vmem:[#allocation8 + $0x2c] sm:$0xf]
    %v248 = vld [vmem:[#allocation8 + $0x30] sm:$0xff]
    %v249 = vld [vmem:[#allocation8 + $0x38] sm:$0xf]
    %v250 = vld [vmem:[#allocation8 + $0x3c] sm:$0xff]
    %v251 = vld [vmem:[#allocation8 + $0x44] sm:$0xf]
    %v252 = vld [vmem:[#allocation8 + $0x48] sm:$0xff]
    %v253 = vld [vmem:[#allocation8 + $0x50] sm:$0xf]
    %v254 = vld [vmem:[#allocation8 + $0x54] sm:$0xff]
    %v255 = vld [vmem:[#allocation8 + $0x5c] sm:$0xf]
    %v256 = vld [vmem:[#allocation8 + $0x60] sm:$0xff]
    %v257 = vld [vmem:[#allocation8 + $0x68] sm:$0xf]
    %v258 = vld [vmem:[#allocation8 + $0x6c] sm:$0xff]
    %v259 = vld [vmem:[#allocation8 + $0x74] sm:$0xf]
    %v260 = vld [vmem:[#allocation8 + $0x78] sm:$0xff]
    %v261 = vld [vmem:[#allocation8 + $0x80] sm:$0xf]
    %v262 = vld [vmem:[#allocation8 + $0x84] sm:$0xff]
    %v263 = vld [vmem:[#allocation8 + $0x8c] sm:$0xf]
    %v264 = vld [vmem:[#allocation8 + $0x90] sm:$0xff]
    %v265 = vld [vmem:[#allocation8 + $0x98] sm:$0xf]
    %v266 = vld [vmem:[#allocation8 + $0x9c] sm:$0xff]
    %v267 = vld [vmem:[#allocation8 + $0xa4] sm:$0xf]
    %v268 = vld [vmem:[#allocation8 + $0xa8] sm:$0xff]
    %v269 = vld [vmem:[#allocation8 + $0xb0] sm:$0xf]
    %v270 = vld [vmem:[#allocation8 + $0xb4] sm:$0xff]
    %v271 = vld [vmem:[#allocation8 + $0xbc] sm:$0xf]
    %v272 = vld [vmem:[#allocation10] sm:$0xff]
    %v273 = vpack.c.bf16 %v239, %v238
    %v274 = vlaneseq
    %v275 = vshrl.u32 %v274, 7
    %v276 = vsub.s32 0, %v275
    %v277 = vrot.slane %v272, %v276
    %v294 = vunpack.c.l.b16 %v240
    %v295 = vunpack.c.l.b16 %v242
    %v296 = vunpack.c.l.b16 %v244
    %v297 = vunpack.c.l.b16 %v246
    %v298 = vunpack.c.l.b16 %v248
    %v299 = vunpack.c.l.b16 %v250
    %v300 = vunpack.c.l.b16 %v252
    %v301 = vunpack.c.l.b16 %v254
    %v302 = vunpack.c.l.b16 %v256
    %v303 = vunpack.c.l.b16 %v258
    %v304 = vunpack.c.l.b16 %v260
    %v305 = vunpack.c.l.b16 %v262
    %v306 = vunpack.c.l.b16 %v264
    %v307 = vunpack.c.l.b16 %v266
    %v308 = vunpack.c.l.b16 %v268
    %v309 = vunpack.c.l.b16 %v270
    %v310 = vpack.c.b16 %v295, %v294
    %v311 = vpack.c.b16 %v297, %v296
    %v312 = vpack.c.b16 %v299, %v298
    %v313 = vpack.c.b16 %v301, %v300
    %v314 = vpack.c.b16 %v303, %v302
    %v315 = vpack.c.b16 %v305, %v304
    %v316 = vpack.c.b16 %v307, %v306
    %v317 = vpack.c.b16 %v309, %v308
    %326 = vmatprep.subr.bf16.mxu0 0
    %327 = vmatpush1.bf16.msra.mxu0 %v317
    %328 = vmatprep.subr.bf16.mxu0 0
    %329 = vmatpush1.bf16.msra.mxu0 %v316
    %330 = vmatprep.subr.bf16.mxu0 0
    %331 = vmatpush1.bf16.msra.mxu0 %v315
    %332 = vmatprep.subr.bf16.mxu0 0
    %333 = vmatpush1.bf16.msra.mxu0 %v314
    %334 = vmatprep.subr.bf16.mxu0 0
    %335 = vmatpush1.bf16.msra.mxu0 %v313
    %336 = vmatprep.subr.bf16.mxu0 0
    %337 = vmatpush1.bf16.msra.mxu0 %v312
    %338 = vmatprep.subr.bf16.mxu0 0
    %339 = vmatpush1.bf16.msra.mxu0 %v311
    %340 = vmatprep.subr.bf16.mxu0 0
    %341 = vmatpush1.bf16.msra.mxu0 %v310
    %342 = vmatprep.subr.bf16.mxu0 0
    %343 = vmatpush2.bf16.msra.mxu0 0
    %344 = vmatprep.subr.bf16.mxu0 0
    %345 = vmatpush2.bf16.msra.mxu0 0
    %346 = vmatprep.subr.bf16.mxu0 0
    %347 = vmatpush2.bf16.msra.mxu0 0
    %348 = vmatprep.subr.bf16.mxu0 0
    %349 = vmatpush2.bf16.msra.mxu0 0
    %350 = vmatprep.subr.bf16.mxu0 0
    %351 = vmatpush2.bf16.msra.mxu0 0
    %352 = vmatprep.subr.bf16.mxu0 0
    %353 = vmatpush2.bf16.msra.mxu0 0
    %354 = vmatprep.subr.bf16.mxu0 0
    %355 = vmatpush2.bf16.msra.mxu0 0
    %356 = vmatprep.subr.bf16.mxu0 0
    %357 = vmatpush2.bf16.msra.mxu0 0
    %358 = vmatprep.mubr.bf16.mxu0 0
    %359 = vmatmul.mubr.bf16.gmra.mxu0 %v273
    %v360 = vpop.f32.mrf.mxu0
    %v361 = vadd.f32 %v277, %v360
    %v362 = vpop.f32.mrf.mxu0
    %v363 = vpop.f32.mrf.mxu0
    %v364 = vadd.f32 %v277, %v363
    %v365 = vpop.f32.mrf.mxu0
    %366 = vdwg.mxu0
    %v367 = vadd.f32 %v238, %v361
    %v368 = vadd.f32 %v239, %v364
    %369 = vadd.xlane.f32.xlu0 %v367
    %v370 = vpop.xlane.xlu0 %369
    %371 = vadd.xlane.f32.xlu0 %v368
    %v372 = vpop.xlane.xlu0 %371
    %v373 = vmul.f32 %v370, %v205
    %v374 = vmul.f32 %v372, %v205
    %v375 = vmul.f32 %v367, %v367
    %v376 = vmul.f32 %v368, %v368
    %377 = vadd.xlane.f32.xlu0 %v375
    %v378 = vpop.xlane.xlu0 %377
    %379 = vadd.xlane.f32.xlu0 %v376
    %v380 = vpop.xlane.xlu0 %379
    %v381 = vmul.f32 %v378, %v205
    %v382 = vmul.f32 %v380, %v205
    %v383 = vmul.f32 %v373, %v373
    %v384 = vmul.f32 %v374, %v374
    %v385 = vsub.f32 %v381, %v383
    %v386 = vsub.f32 %v382, %v384
    %v387 = vsub.f32 %v367, %v373
    %v388 = vsub.f32 %v368, %v374
    %v389 = vadd.f32 %v385, 1e-05
    %v390 = vadd.f32 %v386, 1e-05
    %v391 = vrsqrt.pop %v389
    %v392 = vrsqrt.pop %v390
    %v393 = vmul.f32 %v387, %v391
    %v394 = vmul.f32 %v388, %v392
    %v395 = vlaneseq
    %v396 = vshrl.u32 %v395, 7
    %v397 = vsub.s32 1, %v396
    %v398 = vrot.slane %v272, %v397
    %v399 = vmul.f32 %v393, %v398
    %v400 = vmul.f32 %v394, %v398
    %v401 = vlaneseq
    %v402 = vshrl.u32 %v401, 7
    %v403 = vsub.s32 2, %v402
    %v404 = vrot.slane %v272, %v403
    %v405 = vadd.f32 %v399, %v404
    %v406 = vadd.f32 %v400, %v404
    %v407 = vpack.c.bf16 %v406, %v405
    %v408 = vlaneseq
    %v409 = vshrl.u32 %v408, 7
    %v410 = vsub.s32 3, %v409
    %v411 = vrot.slane %v272, %v410
    %v412 = vunpack.c.h.b16 %v240
    %v413 = vunpack.c.h.b16 %v242
    %v414 = vunpack.c.h.b16 %v244
    %v415 = vunpack.c.h.b16 %v246
    %v416 = vunpack.c.h.b16 %v248
    %v417 = vunpack.c.h.b16 %v250
    %v418 = vunpack.c.h.b16 %v252
    %v419 = vunpack.c.h.b16 %v254
    %v420 = vunpack.c.h.b16 %v256
    %v421 = vunpack.c.h.b16 %v258
    %v422 = vunpack.c.h.b16 %v260
    %v423 = vunpack.c.h.b16 %v262
    %v424 = vunpack.c.h.b16 %v264
    %v425 = vunpack.c.h.b16 %v266
    %v426 = vunpack.c.h.b16 %v268
    %v427 = vunpack.c.h.b16 %v270
    %v428 = vpack.c.b16 %v413, %v412
    %v429 = vpack.c.b16 %v415, %v414
    %v430 = vpack.c.b16 %v417, %v416
    %v431 = vpack.c.b16 %v419, %v418
    %v432 = vpack.c.b16 %v421, %v420
    %v433 = vpack.c.b16 %v423, %v422
    %v434 = vpack.c.b16 %v425, %v424
    %v435 = vpack.c.b16 %v427, %v426
    %444 = vmatprep.subr.bf16.mxu0 0
    %445 = vmatpush1.bf16.msra.mxu0 %v435
    %446 = vmatprep.subr.bf16.mxu0 0
    %447 = vmatpush1.bf16.msra.mxu0 %v434
    %448 = vmatprep.subr.bf16.mxu0 0
    %449 = vmatpush1.bf16.msra.mxu0 %v433
    %450 = vmatprep.subr.bf16.mxu0 0
    %451 = vmatpush1.bf16.msra.mxu0 %v432
    %452 = vmatprep.subr.bf16.mxu0 0
    %453 = vmatpush1.bf16.msra.mxu0 %v431
    %454 = vmatprep.subr.bf16.mxu0 0
    %455 = vmatpush1.bf16.msra.mxu0 %v430
    %456 = vmatprep.subr.bf16.mxu0 0
    %457 = vmatpush1.bf16.msra.mxu0 %v429
    %458 = vmatprep.subr.bf16.mxu0 0
    %459 = vmatpush1.bf16.msra.mxu0 %v428
    %460 = vmatprep.subr.bf16.mxu0 0
    %461 = vmatpush2.bf16.msra.mxu0 0
    %462 = vmatprep.subr.bf16.mxu0 0
    %463 = vmatpush2.bf16.msra.mxu0 0
    %464 = vmatprep.subr.bf16.mxu0 0
    %465 = vmatpush2.bf16.msra.mxu0 0
    %466 = vmatprep.subr.bf16.mxu0 0
    %467 = vmatpush2.bf16.msra.mxu0 0
    %468 = vmatprep.subr.bf16.mxu0 0
    %469 = vmatpush2.bf16.msra.mxu0 0
    %470 = vmatprep.subr.bf16.mxu0 0
    %471 = vmatpush2.bf16.msra.mxu0 0
    %472 = vmatprep.subr.bf16.mxu0 0
    %473 = vmatpush2.bf16.msra.mxu0 0
    %474 = vmatprep.subr.bf16.mxu0 0
    %475 = vmatpush2.bf16.msra.mxu0 0
    %476 = vmatprep.mubr.bf16.mxu0 0
    %477 = vmatmul.mubr.bf16.gmra.mxu0 %v407
    %v478 = vpop.f32.mrf.mxu0
    %v479 = vadd.f32 %v411, %v478
    %v480 = vpop.f32.mrf.mxu0
    %v481 = vpop.f32.mrf.mxu0
    %v482 = vadd.f32 %v411, %v481
    %v483 = vpop.f32.mrf.mxu0
    %484 = vdwg.mxu0
    %v485 = vmax.f32 %v479, 0.0
    %v486 = vmax.f32 %v482, 0.0
    %v487 = vpack.c.bf16 %v486, %v485
    %v488 = vlaneseq
    %v489 = vshrl.u32 %v488, 7
    %v490 = vsub.s32 4, %v489
    %v491 = vrot.slane %v272, %v490
    %v508 = vunpack.c.l.b16 %v241
    %v509 = vunpack.c.l.b16 %v243
    %v510 = vunpack.c.l.b16 %v245
    %v511 = vunpack.c.l.b16 %v247
    %v512 = vunpack.c.l.b16 %v249
    %v513 = vunpack.c.l.b16 %v251
    %v514 = vunpack.c.l.b16 %v253
    %v515 = vunpack.c.l.b16 %v255
    %v516 = vunpack.c.l.b16 %v257
    %v517 = vunpack.c.l.b16 %v259
    %v518 = vunpack.c.l.b16 %v261
    %v519 = vunpack.c.l.b16 %v263
    %v520 = vunpack.c.l.b16 %v265
    %v521 = vunpack.c.l.b16 %v267
    %v522 = vunpack.c.l.b16 %v269
    %v523 = vunpack.c.l.b16 %v271
    %v524 = vpack.c.b16 %v509, %v508
    %v525 = vpack.c.b16 %v511, %v510
    %v526 = vpack.c.b16 %v513, %v512
    %v527 = vpack.c.b16 %v515, %v514
    %v528 = vpack.c.b16 %v517, %v516
    %v529 = vpack.c.b16 %v519, %v518
    %v530 = vpack.c.b16 %v521, %v520
    %v531 = vpack.c.b16 %v523, %v522
    %540 = vmatprep.subr.bf16.mxu0 0
    %541 = vmatpush1.bf16.msra.mxu0 %v531
    %542 = vmatprep.subr.bf16.mxu0 0
    %543 = vmatpush1.bf16.msra.mxu0 %v530
    %544 = vmatprep.subr.bf16.mxu0 0
    %545 = vmatpush1.bf16.msra.mxu0 %v529
    %546 = vmatprep.subr.bf16.mxu0 0
    %547 = vmatpush1.bf16.msra.mxu0 %v528
    %548 = vmatprep.subr.bf16.mxu0 0
    %549 = vmatpush1.bf16.msra.mxu0 %v527
    %550 = vmatprep.subr.bf16.mxu0 0
    %551 = vmatpush1.bf16.msra.mxu0 %v526
    %552 = vmatprep.subr.bf16.mxu0 0
    %553 = vmatpush1.bf16.msra.mxu0 %v525
    %554 = vmatprep.subr.bf16.mxu0 0
    %555 = vmatpush1.bf16.msra.mxu0 %v524
    %556 = vmatprep.subr.bf16.mxu0 0
    %557 = vmatpush2.bf16.msra.mxu0 0
    %558 = vmatprep.subr.bf16.mxu0 0
    %559 = vmatpush2.bf16.msra.mxu0 0
    %560 = vmatprep.subr.bf16.mxu0 0
    %561 = vmatpush2.bf16.msra.mxu0 0
    %562 = vmatprep.subr.bf16.mxu0 0
    %563 = vmatpush2.bf16.msra.mxu0 0
    %564 = vmatprep.subr.bf16.mxu0 0
    %565 = vmatpush2.bf16.msra.mxu0 0
    %566 = vmatprep.subr.bf16.mxu0 0
    %567 = vmatpush2.bf16.msra.mxu0 0
    %568 = vmatprep.subr.bf16.mxu0 0
    %569 = vmatpush2.bf16.msra.mxu0 0
    %570 = vmatprep.subr.bf16.mxu0 0
    %571 = vmatpush2.bf16.msra.mxu0 0
    %572 = vmatprep.mubr.bf16.mxu0 0
    %573 = vmatmul.mubr.bf16.gmra.mxu0 %v487
    %v574 = vpop.f32.mrf.mxu0
    %v575 = vadd.f32 %v491, %v574
    %v576 = vpop.f32.mrf.mxu0
    %v577 = vpop.f32.mrf.mxu0
    %v578 = vadd.f32 %v491, %v577
    %v579 = vpop.f32.mrf.mxu0
    %580 = vdwg.mxu0
    %v581 = vadd.f32 %v405, %v575
    %v582 = vadd.f32 %v406, %v578
    %583 = vadd.xlane.f32.xlu0 %v581
    %v584 = vpop.xlane.xlu0 %583
    %585 = vadd.xlane.f32.xlu0 %v582
    %v586 = vpop.xlane.xlu0 %585
    %v587 = vmul.f32 %v584, %v205
    %v588 = vmul.f32 %v586, %v205
    %v589 = vmul.f32 %v581, %v581
    %v590 = vmul.f32 %v582, %v582
    %591 = vadd.xlane.f32.xlu0 %v589
    %v592 = vpop.xlane.xlu0 %591
    %593 = vadd.xlane.f32.xlu0 %v590
    %v594 = vpop.xlane.xlu0 %593
    %v595 = vmul.f32 %v592, %v205
    %v596 = vmul.f32 %v594, %v205
    %v597 = vmul.f32 %v587, %v587
    %v598 = vmul.f32 %v588, %v588
    %v599 = vsub.f32 %v595, %v597
    %v600 = vsub.f32 %v596, %v598
    %v601 = vsub.f32 %v581, %v587
    %v602 = vsub.f32 %v582, %v588
    %v603 = vadd.f32 %v599, 1e-05
    %v604 = vadd.f32 %v600, 1e-05
    %v605 = vrsqrt.pop %v603
    %v606 = vrsqrt.pop %v604
    %v607 = vmul.f32 %v601, %v605
    %v608 = vmul.f32 %v602, %v606
    %v609 = vlaneseq
    %v610 = vshrl.u32 %v609, 7
    %v611 = vsub.s32 5, %v610
    %v612 = vrot.slane %v272, %v611
    %v613 = vmul.f32 %v607, %v612
    %v614 = vmul.f32 %v608, %v612
    %v615 = vlaneseq
    %v616 = vshrl.u32 %v615, 7
    %v617 = vsub.s32 6, %v616
    %v618 = vrot.slane %v272, %v617
    %v619 = vadd.f32 %v613, %v618
    %v620 = vadd.f32 %v614, %v618
    %s621 = scalar_lea.vmem [#allocation8], 192
    %v622 = vld [vmem:[%s621] sm:$0xff]
    %v623 = vld [vmem:[%s621 + $0x8] sm:$0xf]
    %v624 = vld [vmem:[%s621 + $0xc] sm:$0xff]
    %v625 = vld [vmem:[%s621 + $0x14] sm:$0xf]
    %v626 = vld [vmem:[%s621 + $0x18] sm:$0xff]
    %v627 = vld [vmem:[%s621 + $0x20] sm:$0xf]
    %v628 = vld [vmem:[%s621 + $0x24] sm:$0xff]
    %v629 = vld [vmem:[%s621 + $0x2c] sm:$0xf]
    %v630 = vld [vmem:[%s621 + $0x30] sm:$0xff]
    %v631 = vld [vmem:[%s621 + $0x38] sm:$0xf]
    %v632 = vld [vmem:[%s621 + $0x3c] sm:$0xff]
    %v633 = vld [vmem:[%s621 + $0x44] sm:$0xf]
    %v634 = vld [vmem:[%s621 + $0x48] sm:$0xff]
    %v635 = vld [vmem:[%s621 + $0x50] sm:$0xf]
    %v636 = vld [vmem:[%s621 + $0x54] sm:$0xff]
    %v637 = vld [vmem:[%s621 + $0x5c] sm:$0xf]
    %v638 = vld [vmem:[%s621 + $0x60] sm:$0xff]
    %v639 = vld [vmem:[%s621 + $0x68] sm:$0xf]
    %v640 = vld [vmem:[%s621 + $0x6c] sm:$0xff]
    %v641 = vld [vmem:[%s621 + $0x74] sm:$0xf]
    %v642 = vld [vmem:[%s621 + $0x78] sm:$0xff]
    %v643 = vld [vmem:[%s621 + $0x80] sm:$0xf]
    %v644 = vld [vmem:[%s621 + $0x84] sm:$0xff]
    %v645 = vld [vmem:[%s621 + $0x8c] sm:$0xf]
    %v646 = vld [vmem:[%s621 + $0x90] sm:$0xff]
    %v647 = vld [vmem:[%s621 + $0x98] sm:$0xf]
    %v648 = vld [vmem:[%s621 + $0x9c] sm:$0xff]
    %v649 = vld [vmem:[%s621 + $0xa4] sm:$0xf]
    %v650 = vld [vmem:[%s621 + $0xa8] sm:$0xff]
    %v651 = vld [vmem:[%s621 + $0xb0] sm:$0xf]
    %v652 = vld [vmem:[%s621 + $0xb4] sm:$0xff]
    %v653 = vld [vmem:[%s621 + $0xbc] sm:$0xf]
    %s654 = scalar_lea.vmem [#allocation10], 8
    %v655 = vld [vmem:[%s654] sm:$0xff]
    %v656 = vpack.c.bf16 %v620, %v619
    %v657 = vlaneseq
    %v658 = vshrl.u32 %v657, 7
    %v659 = vsub.s32 0, %v658
    %v660 = vrot.slane %v655, %v659
    %v677 = vunpack.c.l.b16 %v622
    %v678 = vunpack.c.l.b16 %v624
    %v679 = vunpack.c.l.b16 %v626
    %v680 = vunpack.c.l.b16 %v628
    %v681 = vunpack.c.l.b16 %v630
    %v682 = vunpack.c.l.b16 %v632
    %v683 = vunpack.c.l.b16 %v634
    %v684 = vunpack.c.l.b16 %v636
    %v685 = vunpack.c.l.b16 %v638
    %v686 = vunpack.c.l.b16 %v640
    %v687 = vunpack.c.l.b16 %v642
    %v688 = vunpack.c.l.b16 %v644
    %v689 = vunpack.c.l.b16 %v646
    %v690 = vunpack.c.l.b16 %v648
    %v691 = vunpack.c.l.b16 %v650
    %v692 = vunpack.c.l.b16 %v652
    %v693 = vpack.c.b16 %v678, %v677
    %v694 = vpack.c.b16 %v680, %v679
    %v695 = vpack.c.b16 %v682, %v681
    %v696 = vpack.c.b16 %v684, %v683
    %v697 = vpack.c.b16 %v686, %v685
    %v698 = vpack.c.b16 %v688, %v687
    %v699 = vpack.c.b16 %v690, %v689
    %v700 = vpack.c.b16 %v692, %v691
    %709 = vmatprep.subr.bf16.mxu0 0
    %710 = vmatpush1.bf16.msra.mxu0 %v700
    %711 = vmatprep.subr.bf16.mxu0 0
    %712 = vmatpush1.bf16.msra.mxu0 %v699
    %713 = vmatprep.subr.bf16.mxu0 0
    %714 = vmatpush1.bf16.msra.mxu0 %v698
    %715 = vmatprep.subr.bf16.mxu0 0
    %716 = vmatpush1.bf16.msra.mxu0 %v697
    %717 = vmatprep.subr.bf16.mxu0 0
    %718 = vmatpush1.bf16.msra.mxu0 %v696
    %719 = vmatprep.subr.bf16.mxu0 0
    %720 = vmatpush1.bf16.msra.mxu0 %v695
    %721 = vmatprep.subr.bf16.mxu0 0
    %722 = vmatpush1.bf16.msra.mxu0 %v694
    %723 = vmatprep.subr.bf16.mxu0 0
    %724 = vmatpush1.bf16.msra.mxu0 %v693
    %725 = vmatprep.subr.bf16.mxu0 0
    %726 = vmatpush2.bf16.msra.mxu0 0
    %727 = vmatprep.subr.bf16.mxu0 0
    %728 = vmatpush2.bf16.msra.mxu0 0
    %729 = vmatprep.subr.bf16.mxu0 0
    %730 = vmatpush2.bf16.msra.mxu0 0
    %731 = vmatprep.subr.bf16.mxu0 0
    %732 = vmatpush2.bf16.msra.mxu0 0
    %733 = vmatprep.subr.bf16.mxu0 0
    %734 = vmatpush2.bf16.msra.mxu0 0
    %735 = vmatprep.subr.bf16.mxu0 0
    %736 = vmatpush2.bf16.msra.mxu0 0
    %737 = vmatprep.subr.bf16.mxu0 0
    %738 = vmatpush2.bf16.msra.mxu0 0
    %739 = vmatprep.subr.bf16.mxu0 0
    %740 = vmatpush2.bf16.msra.mxu0 0
    %741 = vmatprep.mubr.bf16.mxu0 0
    %742 = vmatmul.mubr.bf16.gmra.mxu0 %v656
    %v743 = vpop.f32.mrf.mxu0
    %v744 = vadd.f32 %v660, %v743
    %v745 = vpop.f32.mrf.mxu0
    %v746 = vpop.f32.mrf.mxu0
    %v747 = vadd.f32 %v660, %v746
    %v748 = vpop.f32.mrf.mxu0
    %749 = vdwg.mxu0
    %v750 = vadd.f32 %v619, %v744
    %v751 = vadd.f32 %v620, %v747
    %752 = vadd.xlane.f32.xlu0 %v750
    %v753 = vpop.xlane.xlu0 %752
    %754 = vadd.xlane.f32.xlu0 %v751
    %v755 = vpop.xlane.xlu0 %754
    %v756 = vmul.f32 %v753, %v205
    %v757 = vmul.f32 %v755, %v205
    %v758 = vmul.f32 %v750, %v750
    %v759 = vmul.f32 %v751, %v751
    %760 = vadd.xlane.f32.xlu0 %v758
    %v761 = vpop.xlane.xlu0 %760
    %762 = vadd.xlane.f32.xlu0 %v759
    %v763 = vpop.xlane.xlu0 %762
    %v764 = vmul.f32 %v761, %v205
    %v765 = vmul.f32 %v763, %v205
    %v766 = vmul.f32 %v756, %v756
    %v767 = vmul.f32 %v757, %v757
    %v768 = vsub.f32 %v764, %v766
    %v769 = vsub.f32 %v765, %v767
    %v770 = vsub.f32 %v750, %v756
    %v771 = vsub.f32 %v751, %v757
    %v772 = vadd.f32 %v768, 1e-05
    %v773 = vadd.f32 %v769, 1e-05
    %v774 = vrsqrt.pop %v772
    %v775 = vrsqrt.pop %v773
    %v776 = vmul.f32 %v770, %v774
    %v777 = vmul.f32 %v771, %v775
    %v778 = vlaneseq
    %v779 = vshrl.u32 %v778, 7
    %v780 = vsub.s32 1, %v779
    %v781 = vrot.slane %v655, %v780
    %v782 = vmul.f32 %v776, %v781
    %v783 = vmul.f32 %v777, %v781
    %v784 = vlaneseq
    %v785 = vshrl.u32 %v784, 7
    %v786 = vsub.s32 2, %v785
    %v787 = vrot.slane %v655, %v786
    %v788 = vadd.f32 %v782, %v787
    %v789 = vadd.f32 %v783, %v787
    %v790 = vpack.c.bf16 %v789, %v788
    %v791 = vlaneseq
    %v792 = vshrl.u32 %v791, 7
    %v793 = vsub.s32 3, %v792
    %v794 = vrot.slane %v655, %v793
    %v795 = vunpack.c.h.b16 %v622
    %v796 = vunpack.c.h.b16 %v624
    %v797 = vunpack.c.h.b16 %v626
    %v798 = vunpack.c.h.b16 %v628
    %v799 = vunpack.c.h.b16 %v630
    %v800 = vunpack.c.h.b16 %v632
    %v801 = vunpack.c.h.b16 %v634
    %v802 = vunpack.c.h.b16 %v636
    %v803 = vunpack.c.h.b16 %v638
    %v804 = vunpack.c.h.b16 %v640
    %v805 = vunpack.c.h.b16 %v642
    %v806 = vunpack.c.h.b16 %v644
    %v807 = vunpack.c.h.b16 %v646
    %v808 = vunpack.c.h.b16 %v648
    %v809 = vunpack.c.h.b16 %v650
    %v810 = vunpack.c.h.b16 %v652
    %v811 = vpack.c.b16 %v796, %v795
    %v812 = vpack.c.b16 %v798, %v797
    %v813 = vpack.c.b16 %v800, %v799
    %v814 = vpack.c.b16 %v802, %v801
    %v815 = vpack.c.b16 %v804, %v803
    %v816 = vpack.c.b16 %v806, %v805
    %v817 = vpack.c.b16 %v808, %v807
    %v818 = vpack.c.b16 %v810, %v809
    %827 = vmatprep.subr.bf16.mxu0 0
    %828 = vmatpush1.bf16.msra.mxu0 %v818
    %829 = vmatprep.subr.bf16.mxu0 0
    %830 = vmatpush1.bf16.msra.mxu0 %v817
    %831 = vmatprep.subr.bf16.mxu0 0
    %832 = vmatpush1.bf16.msra.mxu0 %v816
    %833 = vmatprep.subr.bf16.mxu0 0
    %834 = vmatpush1.bf16.msra.mxu0 %v815
    %835 = vmatprep.subr.bf16.mxu0 0
    %836 = vmatpush1.bf16.msra.mxu0 %v814
    %837 = vmatprep.subr.bf16.mxu0 0
    %838 = vmatpush1.bf16.msra.mxu0 %v813
    %839 = vmatprep.subr.bf16.mxu0 0
    %840 = vmatpush1.bf16.msra.mxu0 %v812
    %841 = vmatprep.subr.bf16.mxu0 0
    %842 = vmatpush1.bf16.msra.mxu0 %v811
    %843 = vmatprep.subr.bf16.mxu0 0
    %844 = vmatpush2.bf16.msra.mxu0 0
    %845 = vmatprep.subr.bf16.mxu0 0
    %846 = vmatpush2.bf16.msra.mxu0 0
    %847 = vmatprep.subr.bf16.mxu0 0
    %848 = vmatpush2.bf16.msra.mxu0 0
    %849 = vmatprep.subr.bf16.mxu0 0
    %850 = vmatpush2.bf16.msra.mxu0 0
    %851 = vmatprep.subr.bf16.mxu0 0
    %852 = vmatpush2.bf16.msra.mxu0 0
    %853 = vmatprep.subr.bf16.mxu0 0
    %854 = vmatpush2.bf16.msra.mxu0 0
    %855 = vmatprep.subr.bf16.mxu0 0
    %856 = vmatpush2.bf16.msra.mxu0 0
    %857 = vmatprep.subr.bf16.mxu0 0
    %858 = vmatpush2.bf16.msra.mxu0 0
    %859 = vmatprep.mubr.bf16.mxu0 0
    %860 = vmatmul.mubr.bf16.gmra.mxu0 %v790
    %v861 = vpop.f32.mrf.mxu0
    %v862 = vadd.f32 %v794, %v861
    %v863 = vpop.f32.mrf.mxu0
    %v864 = vpop.f32.mrf.mxu0
    %v865 = vadd.f32 %v794, %v864
    %v866 = vpop.f32.mrf.mxu0
    %867 = vdwg.mxu0
    %v868 = vmax.f32 %v862, 0.0
    %v869 = vmax.f32 %v865, 0.0
    %v870 = vpack.c.bf16 %v869, %v868
    %v871 = vlaneseq
    %v872 = vshrl.u32 %v871, 7
    %v873 = vsub.s32 4, %v872
    %v874 = vrot.slane %v655, %v873
    %v891 = vunpack.c.l.b16 %v623
    %v892 = vunpack.c.l.b16 %v625
    %v893 = vunpack.c.l.b16 %v627
    %v894 = vunpack.c.l.b16 %v629
    %v895 = vunpack.c.l.b16 %v631
    %v896 = vunpack.c.l.b16 %v633
    %v897 = vunpack.c.l.b16 %v635
    %v898 = vunpack.c.l.b16 %v637
    %v899 = vunpack.c.l.b16 %v639
    %v900 = vunpack.c.l.b16 %v641
    %v901 = vunpack.c.l.b16 %v643
    %v902 = vunpack.c.l.b16 %v645
    %v903 = vunpack.c.l.b16 %v647
    %v904 = vunpack.c.l.b16 %v649
    %v905 = vunpack.c.l.b16 %v651
    %v906 = vunpack.c.l.b16 %v653
    %v907 = vpack.c.b16 %v892, %v891
    %v908 = vpack.c.b16 %v894, %v893
    %v909 = vpack.c.b16 %v896, %v895
    %v910 = vpack.c.b16 %v898, %v897
    %v911 = vpack.c.b16 %v900, %v899
    %v912 = vpack.c.b16 %v902, %v901
    %v913 = vpack.c.b16 %v904, %v903
    %v914 = vpack.c.b16 %v906, %v905
    %923 = vmatprep.subr.bf16.mxu0 0
    %924 = vmatpush1.bf16.msra.mxu0 %v914
    %925 = vmatprep.subr.bf16.mxu0 0
    %926 = vmatpush1.bf16.msra.mxu0 %v913
    %927 = vmatprep.subr.bf16.mxu0 0
    %928 = vmatpush1.bf16.msra.mxu0 %v912
    %929 = vmatprep.subr.bf16.mxu0 0
    %930 = vmatpush1.bf16.msra.mxu0 %v911
    %931 = vmatprep.subr.bf16.mxu0 0
    %932 = vmatpush1.bf16.msra.mxu0 %v910
    %933 = vmatprep.subr.bf16.mxu0 0
    %934 = vmatpush1.bf16.msra.mxu0 %v909
    %935 = vmatprep.subr.bf16.mxu0 0
    %936 = vmatpush1.bf16.msra.mxu0 %v908
    %937 = vmatprep.subr.bf16.mxu0 0
    %938 = vmatpush1.bf16.msra.mxu0 %v907
    %939 = vmatprep.subr.bf16.mxu0 0
    %940 = vmatpush2.bf16.msra.mxu0 0
    %941 = vmatprep.subr.bf16.mxu0 0
    %942 = vmatpush2.bf16.msra.mxu0 0
    %943 = vmatprep.subr.bf16.mxu0 0
    %944 = vmatpush2.bf16.msra.mxu0 0
    %945 = vmatprep.subr.bf16.mxu0 0
    %946 = vmatpush2.bf16.msra.mxu0 0
    %947 = vmatprep.subr.bf16.mxu0 0
    %948 = vmatpush2.bf16.msra.mxu0 0
    %949 = vmatprep.subr.bf16.mxu0 0
    %950 = vmatpush2.bf16.msra.mxu0 0
    %951 = vmatprep.subr.bf16.mxu0 0
    %952 = vmatpush2.bf16.msra.mxu0 0
    %953 = vmatprep.subr.bf16.mxu0 0
    %954 = vmatpush2.bf16.msra.mxu0 0
    %955 = vmatprep.mubr.bf16.mxu0 0
    %956 = vmatmul.mubr.bf16.gmra.mxu0 %v870
    %v957 = vpop.f32.mrf.mxu0
    %v958 = vadd.f32 %v874, %v957
    %v959 = vpop.f32.mrf.mxu0
    %v960 = vpop.f32.mrf.mxu0
    %v961 = vadd.f32 %v874, %v960
    %v962 = vpop.f32.mrf.mxu0
    %963 = vdwg.mxu0
    %v964 = vadd.f32 %v788, %v958
    %v965 = vadd.f32 %v789, %v961
    %966 = vadd.xlane.f32.xlu0 %v964
    %v967 = vpop.xlane.xlu0 %966
    %968 = vadd.xlane.f32.xlu0 %v965
    %v969 = vpop.xlane.xlu0 %968
    %v970 = vmul.f32 %v967, %v205
    %v971 = vmul.f32 %v969, %v205
    %v972 = vmul.f32 %v964, %v964
    %v973 = vmul.f32 %v965, %v965
    %974 = vadd.xlane.f32.xlu0 %v972
    %v975 = vpop.xlane.xlu0 %974
    %976 = vadd.xlane.f32.xlu0 %v973
    %v977 = vpop.xlane.xlu0 %976
    %v978 = vmul.f32 %v975, %v205
    %v979 = vmul.f32 %v977, %v205
    %v980 = vmul.f32 %v970, %v970
    %v981 = vmul.f32 %v971, %v971
    %v982 = vsub.f32 %v978, %v980
    %v983 = vsub.f32 %v979, %v981
    %v984 = vsub.f32 %v964, %v970
    %v985 = vsub.f32 %v965, %v971
    %v986 = vadd.f32 %v982, 1e-05
    %v987 = vadd.f32 %v983, 1e-05
    %v988 = vrsqrt.pop %v986
    %v989 = vrsqrt.pop %v987
    %v990 = vmul.f32 %v984, %v988
    %v991 = vmul.f32 %v985, %v989
    %v992 = vlaneseq
    %v993 = vshrl.u32 %v992, 7
    %v994 = vsub.s32 5, %v993
    %v995 = vrot.slane %v655, %v994
    %v996 = vmul.f32 %v990, %v995
    %v997 = vmul.f32 %v991, %v995
    %v998 = vlaneseq
    %v999 = vshrl.u32 %v998, 7
    %v1000 = vsub.s32 6, %v999
    %v1001 = vrot.slane %v655, %v1000
    %v1002 = vadd.f32 %v996, %v1001
    %v1003 = vadd.f32 %v997, %v1001
    %s1004 = scalar_lea.vmem [#allocation8], 384
    %v1005 = vld [vmem:[%s1004] sm:$0xff]
    %v1006 = vld [vmem:[%s1004 + $0x8] sm:$0xf]
    %v1007 = vld [vmem:[%s1004 + $0xc] sm:$0xff]
    %v1008 = vld [vmem:[%s1004 + $0x14] sm:$0xf]
    %v1009 = vld [vmem:[%s1004 + $0x18] sm:$0xff]
    %v1010 = vld [vmem:[%s1004 + $0x20] sm:$0xf]
    %v1011 = vld [vmem:[%s1004 + $0x24] sm:$0xff]
    %v1012 = vld [vmem:[%s1004 + $0x2c] sm:$0xf]
    %v1013 = vld [vmem:[%s1004 + $0x30] sm:$0xff]
    %v1014 = vld [vmem:[%s1004 + $0x38] sm:$0xf]
    %v1015 = vld [vmem:[%s1004 + $0x3c] sm:$0xff]
    %v1016 = vld [vmem:[%s1004 + $0x44] sm:$0xf]
    %v1017 = vld [vmem:[%s1004 + $0x48] sm:$0xff]
    %v1018 = vld [vmem:[%s1004 + $0x50] sm:$0xf]
    %v1019 = vld [vmem:[%s1004 + $0x54] sm:$0xff]
    %v1020 = vld [vmem:[%s1004 + $0x5c] sm:$0xf]
    %v1021 = vld [vmem:[%s1004 + $0x60] sm:$0xff]
    %v1022 = vld [vmem:[%s1004 + $0x68] sm:$0xf]
    %v1023 = vld [vmem:[%s1004 + $0x6c] sm:$0xff]
    %v1024 = vld [vmem:[%s1004 + $0x74] sm:$0xf]
    %v1025 = vld [vmem:[%s1004 + $0x78] sm:$0xff]
    %v1026 = vld [vmem:[%s1004 + $0x80] sm:$0xf]
    %v1027 = vld [vmem:[%s1004 + $0x84] sm:$0xff]
    %v1028 = vld [vmem:[%s1004 + $0x8c] sm:$0xf]
    %v1029 = vld [vmem:[%s1004 + $0x90] sm:$0xff]
    %v1030 = vld [vmem:[%s1004 + $0x98] sm:$0xf]
    %v1031 = vld [vmem:[%s1004 + $0x9c] sm:$0xff]
    %v1032 = vld [vmem:[%s1004 + $0xa4] sm:$0xf]
    %v1033 = vld [vmem:[%s1004 + $0xa8] sm:$0xff]
    %v1034 = vld [vmem:[%s1004 + $0xb0] sm:$0xf]
    %v1035 = vld [vmem:[%s1004 + $0xb4] sm:$0xff]
    %v1036 = vld [vmem:[%s1004 + $0xbc] sm:$0xf]
    %s1037 = scalar_lea.vmem [#allocation10], 16
    %v1038 = vld [vmem:[%s1037] sm:$0xff]
    %v1039 = vpack.c.bf16 %v1003, %v1002
    %v1040 = vlaneseq
    %v1041 = vshrl.u32 %v1040, 7
    %v1042 = vsub.s32 0, %v1041
    %v1043 = vrot.slane %v1038, %v1042
    %v1060 = vunpack.c.l.b16 %v1005
    %v1061 = vunpack.c.l.b16 %v1007
    %v1062 = vunpack.c.l.b16 %v1009
    %v1063 = vunpack.c.l.b16 %v1011
    %v1064 = vunpack.c.l.b16 %v1013
    %v1065 = vunpack.c.l.b16 %v1015
    %v1066 = vunpack.c.l.b16 %v1017
    %v1067 = vunpack.c.l.b16 %v1019
    %v1068 = vunpack.c.l.b16 %v1021
    %v1069 = vunpack.c.l.b16 %v1023
    %v1070 = vunpack.c.l.b16 %v1025
    %v1071 = vunpack.c.l.b16 %v1027
    %v1072 = vunpack.c.l.b16 %v1029
    %v1073 = vunpack.c.l.b16 %v1031
    %v1074 = vunpack.c.l.b16 %v1033
    %v1075 = vunpack.c.l.b16 %v1035
    %v1076 = vpack.c.b16 %v1061, %v1060
    %v1077 = vpack.c.b16 %v1063, %v1062
    %v1078 = vpack.c.b16 %v1065, %v1064
    %v1079 = vpack.c.b16 %v1067, %v1066
    %v1080 = vpack.c.b16 %v1069, %v1068
    %v1081 = vpack.c.b16 %v1071, %v1070
    %v1082 = vpack.c.b16 %v1073, %v1072
    %v1083 = vpack.c.b16 %v1075, %v1074
    %1092 = vmatprep.subr.bf16.mxu0 0
    %1093 = vmatpush1.bf16.msra.mxu0 %v1083
    %1094 = vmatprep.subr.bf16.mxu0 0
    %1095 = vmatpush1.bf16.msra.mxu0 %v1082
    %1096 = vmatprep.subr.bf16.mxu0 0
    %1097 = vmatpush1.bf16.msra.mxu0 %v1081
    %1098 = vmatprep.subr.bf16.mxu0 0
    %1099 = vmatpush1.bf16.msra.mxu0 %v1080
    %1100 = vmatprep.subr.bf16.mxu0 0
    %1101 = vmatpush1.bf16.msra.mxu0 %v1079
    %1102 = vmatprep.subr.bf16.mxu0 0
    %1103 = vmatpush1.bf16.msra.mxu0 %v1078
    %1104 = vmatprep.subr.bf16.mxu0 0
    %1105 = vmatpush1.bf16.msra.mxu0 %v1077
    %1106 = vmatprep.subr.bf16.mxu0 0
    %1107 = vmatpush1.bf16.msra.mxu0 %v1076
    %1108 = vmatprep.subr.bf16.mxu0 0
    %1109 = vmatpush2.bf16.msra.mxu0 0
    %1110 = vmatprep.subr.bf16.mxu0 0
    %1111 = vmatpush2.bf16.msra.mxu0 0
    %1112 = vmatprep.subr.bf16.mxu0 0
    %1113 = vmatpush2.bf16.msra.mxu0 0
    %1114 = vmatprep.subr.bf16.mxu0 0
    %1115 = vmatpush2.bf16.msra.mxu0 0
    %1116 = vmatprep.subr.bf16.mxu0 0
    %1117 = vmatpush2.bf16.msra.mxu0 0
    %1118 = vmatprep.subr.bf16.mxu0 0
    %1119 = vmatpush2.bf16.msra.mxu0 0
    %1120 = vmatprep.subr.bf16.mxu0 0
    %1121 = vmatpush2.bf16.msra.mxu0 0
    %1122 = vmatprep.subr.bf16.mxu0 0
    %1123 = vmatpush2.bf16.msra.mxu0 0
    %1124 = vmatprep.mubr.bf16.mxu0 0
    %1125 = vmatmul.mubr.bf16.gmra.mxu0 %v1039
    %v1126 = vpop.f32.mrf.mxu0
    %v1127 = vadd.f32 %v1043, %v1126
    %v1128 = vpop.f32.mrf.mxu0
    %v1129 = vpop.f32.mrf.mxu0
    %v1130 = vadd.f32 %v1043, %v1129
    %v1131 = vpop.f32.mrf.mxu0
    %1132 = vdwg.mxu0
    %v1133 = vadd.f32 %v1002, %v1127
    %v1134 = vadd.f32 %v1003, %v1130
    %1135 = vadd.xlane.f32.xlu0 %v1133
    %v1136 = vpop.xlane.xlu0 %1135
    %1137 = vadd.xlane.f32.xlu0 %v1134
    %v1138 = vpop.xlane.xlu0 %1137
    %v1139 = vmul.f32 %v1136, %v205
    %v1140 = vmul.f32 %v1138, %v205
    %v1141 = vmul.f32 %v1133, %v1133
    %v1142 = vmul.f32 %v1134, %v1134
    %1143 = vadd.xlane.f32.xlu0 %v1141
    %v1144 = vpop.xlane.xlu0 %1143
    %1145 = vadd.xlane.f32.xlu0 %v1142
    %v1146 = vpop.xlane.xlu0 %1145
    %v1147 = vmul.f32 %v1144, %v205
    %v1148 = vmul.f32 %v1146, %v205
    %v1149 = vmul.f32 %v1139, %v1139
    %v1150 = vmul.f32 %v1140, %v1140
    %v1151 = vsub.f32 %v1147, %v1149
    %v1152 = vsub.f32 %v1148, %v1150
    %v1153 = vsub.f32 %v1133, %v1139
    %v1154 = vsub.f32 %v1134, %v1140
    %v1155 = vadd.f32 %v1151, 1e-05
    %v1156 = vadd.f32 %v1152, 1e-05
    %v1157 = vrsqrt.pop %v1155
    %v1158 = vrsqrt.pop %v1156
    %v1159 = vmul.f32 %v1153, %v1157
    %v1160 = vmul.f32 %v1154, %v1158
    %v1161 = vlaneseq
    %v1162 = vshrl.u32 %v1161, 7
    %v1163 = vsub.s32 1, %v1162
    %v1164 = vrot.slane %v1038, %v1163
    %v1165 = vmul.f32 %v1159, %v1164
    %v1166 = vmul.f32 %v1160, %v1164
    %v1167 = vlaneseq
    %v1168 = vshrl.u32 %v1167, 7
    %v1169 = vsub.s32 2, %v1168
    %v1170 = vrot.slane %v1038, %v1169
    %v1171 = vadd.f32 %v1165, %v1170
    %v1172 = vadd.f32 %v1166, %v1170
    %v1173 = vpack.c.bf16 %v1172, %v1171
    %v1174 = vlaneseq
    %v1175 = vshrl.u32 %v1174, 7
    %v1176 = vsub.s32 3, %v1175
    %v1177 = vrot.slane %v1038, %v1176
    %v1178 = vunpack.c.h.b16 %v1005
    %v1179 = vunpack.c.h.b16 %v1007
    %v1180 = vunpack.c.h.b16 %v1009
    %v1181 = vunpack.c.h.b16 %v1011
    %v1182 = vunpack.c.h.b16 %v1013
    %v1183 = vunpack.c.h.b16 %v1015
    %v1184 = vunpack.c.h.b16 %v1017
    %v1185 = vunpack.c.h.b16 %v1019
    %v1186 = vunpack.c.h.b16 %v1021
    %v1187 = vunpack.c.h.b16 %v1023
    %v1188 = vunpack.c.h.b16 %v1025
    %v1189 = vunpack.c.h.b16 %v1027
    %v1190 = vunpack.c.h.b16 %v1029
    %v1191 = vunpack.c.h.b16 %v1031
    %v1192 = vunpack.c.h.b16 %v1033
    %v1193 = vunpack.c.h.b16 %v1035
    %v1194 = vpack.c.b16 %v1179, %v1178
    %v1195 = vpack.c.b16 %v1181, %v1180
    %v1196 = vpack.c.b16 %v1183, %v1182
    %v1197 = vpack.c.b16 %v1185, %v1184
    %v1198 = vpack.c.b16 %v1187, %v1186
    %v1199 = vpack.c.b16 %v1189, %v1188
    %v1200 = vpack.c.b16 %v1191, %v1190
    %v1201 = vpack.c.b16 %v1193, %v1192
    %1210 = vmatprep.subr.bf16.mxu0 0
    %1211 = vmatpush1.bf16.msra.mxu0 %v1201
    %1212 = vmatprep.subr.bf16.mxu0 0
    %1213 = vmatpush1.bf16.msra.mxu0 %v1200
    %1214 = vmatprep.subr.bf16.mxu0 0
    %1215 = vmatpush1.bf16.msra.mxu0 %v1199
    %1216 = vmatprep.subr.bf16.mxu0 0
    %1217 = vmatpush1.bf16.msra.mxu0 %v1198
    %1218 = vmatprep.subr.bf16.mxu0 0
    %1219 = vmatpush1.bf16.msra.mxu0 %v1197
    %1220 = vmatprep.subr.bf16.mxu0 0
    %1221 = vmatpush1.bf16.msra.mxu0 %v1196
    %1222 = vmatprep.subr.bf16.mxu0 0
    %1223 = vmatpush1.bf16.msra.mxu0 %v1195
    %1224 = vmatprep.subr.bf16.mxu0 0
    %1225 = vmatpush1.bf16.msra.mxu0 %v1194
    %1226 = vmatprep.subr.bf16.mxu0 0
    %1227 = vmatpush2.bf16.msra.mxu0 0
    %1228 = vmatprep.subr.bf16.mxu0 0
    %1229 = vmatpush2.bf16.msra.mxu0 0
    %1230 = vmatprep.subr.bf16.mxu0 0
    %1231 = vmatpush2.bf16.msra.mxu0 0
    %1232 = vmatprep.subr.bf16.mxu0 0
    %1233 = vmatpush2.bf16.msra.mxu0 0
    %1234 = vmatprep.subr.bf16.mxu0 0
    %1235 = vmatpush2.bf16.msra.mxu0 0
    %1236 = vmatprep.subr.bf16.mxu0 0
    %1237 = vmatpush2.bf16.msra.mxu0 0
    %1238 = vmatprep.subr.bf16.mxu0 0
    %1239 = vmatpush2.bf16.msra.mxu0 0
    %1240 = vmatprep.subr.bf16.mxu0 0
    %1241 = vmatpush2.bf16.msra.mxu0 0
    %1242 = vmatprep.mubr.bf16.mxu0 0
    %1243 = vmatmul.mubr.bf16.gmra.mxu0 %v1173
    %v1244 = vpop.f32.mrf.mxu0
    %v1245 = vadd.f32 %v1177, %v1244
    %v1246 = vpop.f32.mrf.mxu0
    %v1247 = vpop.f32.mrf.mxu0
    %v1248 = vadd.f32 %v1177, %v1247
    %v1249 = vpop.f32.mrf.mxu0
    %1250 = vdwg.mxu0
    %v1251 = vmax.f32 %v1245, 0.0
    %v1252 = vmax.f32 %v1248, 0.0
    %v1253 = vpack.c.bf16 %v1252, %v1251
    %v1254 = vlaneseq
    %v1255 = vshrl.u32 %v1254, 7
    %v1256 = vsub.s32 4, %v1255
    %v1257 = vrot.slane %v1038, %v1256
    %v1274 = vunpack.c.l.b16 %v1006
    %v1275 = vunpack.c.l.b16 %v1008
    %v1276 = vunpack.c.l.b16 %v1010
    %v1277 = vunpack.c.l.b16 %v1012
    %v1278 = vunpack.c.l.b16 %v1014
    %v1279 = vunpack.c.l.b16 %v1016
    %v1280 = vunpack.c.l.b16 %v1018
    %v1281 = vunpack.c.l.b16 %v1020
    %v1282 = vunpack.c.l.b16 %v1022
    %v1283 = vunpack.c.l.b16 %v1024
    %v1284 = vunpack.c.l.b16 %v1026
    %v1285 = vunpack.c.l.b16 %v1028
    %v1286 = vunpack.c.l.b16 %v1030
    %v1287 = vunpack.c.l.b16 %v1032
    %v1288 = vunpack.c.l.b16 %v1034
    %v1289 = vunpack.c.l.b16 %v1036
    %v1290 = vpack.c.b16 %v1275, %v1274
    %v1291 = vpack.c.b16 %v1277, %v1276
    %v1292 = vpack.c.b16 %v1279, %v1278
    %v1293 = vpack.c.b16 %v1281, %v1280
    %v1294 = vpack.c.b16 %v1283, %v1282
    %v1295 = vpack.c.b16 %v1285, %v1284
    %v1296 = vpack.c.b16 %v1287, %v1286
    %v1297 = vpack.c.b16 %v1289, %v1288
    %1306 = vmatprep.subr.bf16.mxu0 0
    %1307 = vmatpush1.bf16.msra.mxu0 %v1297
    %1308 = vmatprep.subr.bf16.mxu0 0
    %1309 = vmatpush1.bf16.msra.mxu0 %v1296
    %1310 = vmatprep.subr.bf16.mxu0 0
    %1311 = vmatpush1.bf16.msra.mxu0 %v1295
    %1312 = vmatprep.subr.bf16.mxu0 0
    %1313 = vmatpush1.bf16.msra.mxu0 %v1294
    %1314 = vmatprep.subr.bf16.mxu0 0
    %1315 = vmatpush1.bf16.msra.mxu0 %v1293
    %1316 = vmatprep.subr.bf16.mxu0 0
    %1317 = vmatpush1.bf16.msra.mxu0 %v1292
    %1318 = vmatprep.subr.bf16.mxu0 0
    %1319 = vmatpush1.bf16.msra.mxu0 %v1291
    %1320 = vmatprep.subr.bf16.mxu0 0
    %1321 = vmatpush1.bf16.msra.mxu0 %v1290
    %1322 = vmatprep.subr.bf16.mxu0 0
    %1323 = vmatpush2.bf16.msra.mxu0 0
    %1324 = vmatprep.subr.bf16.mxu0 0
    %1325 = vmatpush2.bf16.msra.mxu0 0
    %1326 = vmatprep.subr.bf16.mxu0 0
    %1327 = vmatpush2.bf16.msra.mxu0 0
    %1328 = vmatprep.subr.bf16.mxu0 0
    %1329 = vmatpush2.bf16.msra.mxu0 0
    %1330 = vmatprep.subr.bf16.mxu0 0
    %1331 = vmatpush2.bf16.msra.mxu0 0
    %1332 = vmatprep.subr.bf16.mxu0 0
    %1333 = vmatpush2.bf16.msra.mxu0 0
    %1334 = vmatprep.subr.bf16.mxu0 0
    %1335 = vmatpush2.bf16.msra.mxu0 0
    %1336 = vmatprep.subr.bf16.mxu0 0
    %1337 = vmatpush2.bf16.msra.mxu0 0
    %1338 = vmatprep.mubr.bf16.mxu0 0
    %1339 = vmatmul.mubr.bf16.gmra.mxu0 %v1253
    %v1340 = vpop.f32.mrf.mxu0
    %v1341 = vadd.f32 %v1257, %v1340
    %v1342 = vpop.f32.mrf.mxu0
    %v1343 = vpop.f32.mrf.mxu0
    %v1344 = vadd.f32 %v1257, %v1343
    %v1345 = vpop.f32.mrf.mxu0
    %1346 = vdwg.mxu0
    %v1347 = vadd.f32 %v1171, %v1341
    %v1348 = vadd.f32 %v1172, %v1344
    %1349 = vadd.xlane.f32.xlu0 %v1347
    %v1350 = vpop.xlane.xlu0 %1349
    %1351 = vadd.xlane.f32.xlu0 %v1348
    %v1352 = vpop.xlane.xlu0 %1351
    %v1353 = vmul.f32 %v1350, %v205
    %v1354 = vmul.f32 %v1352, %v205
    %v1355 = vmul.f32 %v1347, %v1347
    %v1356 = vmul.f32 %v1348, %v1348
    %1357 = vadd.xlane.f32.xlu0 %v1355
    %v1358 = vpop.xlane.xlu0 %1357
    %1359 = vadd.xlane.f32.xlu0 %v1356
    %v1360 = vpop.xlane.xlu0 %1359
    %v1361 = vmul.f32 %v1358, %v205
    %v1362 = vmul.f32 %v1360, %v205
    %v1363 = vmul.f32 %v1353, %v1353
    %v1364 = vmul.f32 %v1354, %v1354
    %v1365 = vsub.f32 %v1361, %v1363
    %v1366 = vsub.f32 %v1362, %v1364
    %v1367 = vsub.f32 %v1347, %v1353
    %v1368 = vsub.f32 %v1348, %v1354
    %v1369 = vadd.f32 %v1365, 1e-05
    %v1370 = vadd.f32 %v1366, 1e-05
    %v1371 = vrsqrt.pop %v1369
    %v1372 = vrsqrt.pop %v1370
    %v1373 = vmul.f32 %v1367, %v1371
    %v1374 = vmul.f32 %v1368, %v1372
    %v1375 = vlaneseq
    %v1376 = vshrl.u32 %v1375, 7
    %v1377 = vsub.s32 5, %v1376
    %v1378 = vrot.slane %v1038, %v1377
    %v1379 = vmul.f32 %v1373, %v1378
    %v1380 = vmul.f32 %v1374, %v1378
    %v1381 = vlaneseq
    %v1382 = vshrl.u32 %v1381, 7
    %v1383 = vsub.s32 6, %v1382
    %v1384 = vrot.slane %v1038, %v1383
    %v1385 = vadd.f32 %v1379, %v1384
    %v1386 = vadd.f32 %v1380, %v1384
    %s1387 = scalar_lea.vmem [#allocation8], 576
    %v1388 = vld [vmem:[%s1387] sm:$0xff]
    %v1389 = vld [vmem:[%s1387 + $0x8] sm:$0xf]
    %v1390 = vld [vmem:[%s1387 + $0xc] sm:$0xff]
    %v1391 = vld [vmem:[%s1387 + $0x14] sm:$0xf]
    %v1392 = vld [vmem:[%s1387 + $0x18] sm:$0xff]
    %v1393 = vld [vmem:[%s1387 + $0x20] sm:$0xf]
    %v1394 = vld [vmem:[%s1387 + $0x24] sm:$0xff]
    %v1395 = vld [vmem:[%s1387 + $0x2c] sm:$0xf]
    %v1396 = vld [vmem:[%s1387 + $0x30] sm:$0xff]
    %v1397 = vld [vmem:[%s1387 + $0x38] sm:$0xf]
    %v1398 = vld [vmem:[%s1387 + $0x3c] sm:$0xff]
    %v1399 = vld [vmem:[%s1387 + $0x44] sm:$0xf]
    %v1400 = vld [vmem:[%s1387 + $0x48] sm:$0xff]
    %v1401 = vld [vmem:[%s1387 + $0x50] sm:$0xf]
    %v1402 = vld [vmem:[%s1387 + $0x54] sm:$0xff]
    %v1403 = vld [vmem:[%s1387 + $0x5c] sm:$0xf]
    %v1404 = vld [vmem:[%s1387 + $0x60] sm:$0xff]
    %v1405 = vld [vmem:[%s1387 + $0x68] sm:$0xf]
    %v1406 = vld [vmem:[%s1387 + $0x6c] sm:$0xff]
    %v1407 = vld [vmem:[%s1387 + $0x74] sm:$0xf]
    %v1408 = vld [vmem:[%s1387 + $0x78] sm:$0xff]
    %v1409 = vld [vmem:[%s1387 + $0x80] sm:$0xf]
    %v1410 = vld [vmem:[%s1387 + $0x84] sm:$0xff]
    %v1411 = vld [vmem:[%s1387 + $0x8c] sm:$0xf]
    %v1412 = vld [vmem:[%s1387 + $0x90] sm:$0xff]
    %v1413 = vld [vmem:[%s1387 + $0x98] sm:$0xf]
    %v1414 = vld [vmem:[%s1387 + $0x9c] sm:$0xff]
    %v1415 = vld [vmem:[%s1387 + $0xa4] sm:$0xf]
    %v1416 = vld [vmem:[%s1387 + $0xa8] sm:$0xff]
    %v1417 = vld [vmem:[%s1387 + $0xb0] sm:$0xf]
    %v1418 = vld [vmem:[%s1387 + $0xb4] sm:$0xff]
    %v1419 = vld [vmem:[%s1387 + $0xbc] sm:$0xf]
    %s1420 = scalar_lea.vmem [#allocation10], 24
    %v1421 = vld [vmem:[%s1420] sm:$0xff]
    %v1422 = vpack.c.bf16 %v1386, %v1385
    %v1423 = vlaneseq
    %v1424 = vshrl.u32 %v1423, 7
    %v1425 = vsub.s32 0, %v1424
    %v1426 = vrot.slane %v1421, %v1425
    %v1443 = vunpack.c.l.b16 %v1388
    %v1444 = vunpack.c.l.b16 %v1390
    %v1445 = vunpack.c.l.b16 %v1392
    %v1446 = vunpack.c.l.b16 %v1394
    %v1447 = vunpack.c.l.b16 %v1396
    %v1448 = vunpack.c.l.b16 %v1398
    %v1449 = vunpack.c.l.b16 %v1400
    %v1450 = vunpack.c.l.b16 %v1402
    %v1451 = vunpack.c.l.b16 %v1404
    %v1452 = vunpack.c.l.b16 %v1406
    %v1453 = vunpack.c.l.b16 %v1408
    %v1454 = vunpack.c.l.b16 %v1410
    %v1455 = vunpack.c.l.b16 %v1412
    %v1456 = vunpack.c.l.b16 %v1414
    %v1457 = vunpack.c.l.b16 %v1416
    %v1458 = vunpack.c.l.b16 %v1418
    %v1459 = vpack.c.b16 %v1444, %v1443
    %v1460 = vpack.c.b16 %v1446, %v1445
    %v1461 = vpack.c.b16 %v1448, %v1447
    %v1462 = vpack.c.b16 %v1450, %v1449
    %v1463 = vpack.c.b16 %v1452, %v1451
    %v1464 = vpack.c.b16 %v1454, %v1453
    %v1465 = vpack.c.b16 %v1456, %v1455
    %v1466 = vpack.c.b16 %v1458, %v1457
    %1475 = vmatprep.subr.bf16.mxu0 0
    %1476 = vmatpush1.bf16.msra.mxu0 %v1466
    %1477 = vmatprep.subr.bf16.mxu0 0
    %1478 = vmatpush1.bf16.msra.mxu0 %v1465
    %1479 = vmatprep.subr.bf16.mxu0 0
    %1480 = vmatpush1.bf16.msra.mxu0 %v1464
    %1481 = vmatprep.subr.bf16.mxu0 0
    %1482 = vmatpush1.bf16.msra.mxu0 %v1463
    %1483 = vmatprep.subr.bf16.mxu0 0
    %1484 = vmatpush1.bf16.msra.mxu0 %v1462
    %1485 = vmatprep.subr.bf16.mxu0 0
    %1486 = vmatpush1.bf16.msra.mxu0 %v1461
    %1487 = vmatprep.subr.bf16.mxu0 0
    %1488 = vmatpush1.bf16.msra.mxu0 %v1460
    %1489 = vmatprep.subr.bf16.mxu0 0
    %1490 = vmatpush1.bf16.msra.mxu0 %v1459
    %1491 = vmatprep.subr.bf16.mxu0 0
    %1492 = vmatpush2.bf16.msra.mxu0 0
    %1493 = vmatprep.subr.bf16.mxu0 0
    %1494 = vmatpush2.bf16.msra.mxu0 0
    %1495 = vmatprep.subr.bf16.mxu0 0
    %1496 = vmatpush2.bf16.msra.mxu0 0
    %1497 = vmatprep.subr.bf16.mxu0 0
    %1498 = vmatpush2.bf16.msra.mxu0 0
    %1499 = vmatprep.subr.bf16.mxu0 0
    %1500 = vmatpush2.bf16.msra.mxu0 0
    %1501 = vmatprep.subr.bf16.mxu0 0
    %1502 = vmatpush2.bf16.msra.mxu0 0
    %1503 = vmatprep.subr.bf16.mxu0 0
    %1504 = vmatpush2.bf16.msra.mxu0 0
    %1505 = vmatprep.subr.bf16.mxu0 0
    %1506 = vmatpush2.bf16.msra.mxu0 0
    %1507 = vmatprep.mubr.bf16.mxu0 0
    %1508 = vmatmul.mubr.bf16.gmra.mxu0 %v1422
    %v1509 = vpop.f32.mrf.mxu0
    %v1510 = vadd.f32 %v1426, %v1509
    %v1511 = vpop.f32.mrf.mxu0
    %v1512 = vpop.f32.mrf.mxu0
    %v1513 = vadd.f32 %v1426, %v1512
    %v1514 = vpop.f32.mrf.mxu0
    %1515 = vdwg.mxu0
    %v1516 = vadd.f32 %v1385, %v1510
    %v1517 = vadd.f32 %v1386, %v1513
    %1518 = vadd.xlane.f32.xlu0 %v1516
    %v1519 = vpop.xlane.xlu0 %1518
    %1520 = vadd.xlane.f32.xlu0 %v1517
    %v1521 = vpop.xlane.xlu0 %1520
    %v1522 = vmul.f32 %v1519, %v205
    %v1523 = vmul.f32 %v1521, %v205
    %v1524 = vmul.f32 %v1516, %v1516
    %v1525 = vmul.f32 %v1517, %v1517
    %1526 = vadd.xlane.f32.xlu0 %v1524
    %v1527 = vpop.xlane.xlu0 %1526
    %1528 = vadd.xlane.f32.xlu0 %v1525
    %v1529 = vpop.xlane.xlu0 %1528
    %v1530 = vmul.f32 %v1527, %v205
    %v1531 = vmul.f32 %v1529, %v205
    %v1532 = vmul.f32 %v1522, %v1522
    %v1533 = vmul.f32 %v1523, %v1523
    %v1534 = vsub.f32 %v1530, %v1532
    %v1535 = vsub.f32 %v1531, %v1533
    %v1536 = vsub.f32 %v1516, %v1522
    %v1537 = vsub.f32 %v1517, %v1523
    %v1538 = vadd.f32 %v1534, 1e-05
    %v1539 = vadd.f32 %v1535, 1e-05
    %v1540 = vrsqrt.pop %v1538
    %v1541 = vrsqrt.pop %v1539
    %v1542 = vmul.f32 %v1536, %v1540
    %v1543 = vmul.f32 %v1537, %v1541
    %v1544 = vlaneseq
    %v1545 = vshrl.u32 %v1544, 7
    %v1546 = vsub.s32 1, %v1545
    %v1547 = vrot.slane %v1421, %v1546
    %v1548 = vmul.f32 %v1542, %v1547
    %v1549 = vmul.f32 %v1543, %v1547
    %v1550 = vlaneseq
    %v1551 = vshrl.u32 %v1550, 7
    %v1552 = vsub.s32 2, %v1551
    %v1553 = vrot.slane %v1421, %v1552
    %v1554 = vadd.f32 %v1548, %v1553
    %v1555 = vadd.f32 %v1549, %v1553
    %v1556 = vpack.c.bf16 %v1555, %v1554
    %v1557 = vlaneseq
    %v1558 = vshrl.u32 %v1557, 7
    %v1559 = vsub.s32 3, %v1558
    %v1560 = vrot.slane %v1421, %v1559
    %v1561 = vunpack.c.h.b16 %v1388
    %v1562 = vunpack.c.h.b16 %v1390
    %v1563 = vunpack.c.h.b16 %v1392
    %v1564 = vunpack.c.h.b16 %v1394
    %v1565 = vunpack.c.h.b16 %v1396
    %v1566 = vunpack.c.h.b16 %v1398
    %v1567 = vunpack.c.h.b16 %v1400
    %v1568 = vunpack.c.h.b16 %v1402
    %v1569 = vunpack.c.h.b16 %v1404
    %v1570 = vunpack.c.h.b16 %v1406
    %v1571 = vunpack.c.h.b16 %v1408
    %v1572 = vunpack.c.h.b16 %v1410
    %v1573 = vunpack.c.h.b16 %v1412
    %v1574 = vunpack.c.h.b16 %v1414
    %v1575 = vunpack.c.h.b16 %v1416
    %v1576 = vunpack.c.h.b16 %v1418
    %v1577 = vpack.c.b16 %v1562, %v1561
    %v1578 = vpack.c.b16 %v1564, %v1563
    %v1579 = vpack.c.b16 %v1566, %v1565
    %v1580 = vpack.c.b16 %v1568, %v1567
    %v1581 = vpack.c.b16 %v1570, %v1569
    %v1582 = vpack.c.b16 %v1572, %v1571
    %v1583 = vpack.c.b16 %v1574, %v1573
    %v1584 = vpack.c.b16 %v1576, %v1575
    %1593 = vmatprep.subr.bf16.mxu0 0
    %1594 = vmatpush1.bf16.msra.mxu0 %v1584
    %1595 = vmatprep.subr.bf16.mxu0 0
    %1596 = vmatpush1.bf16.msra.mxu0 %v1583
    %1597 = vmatprep.subr.bf16.mxu0 0
    %1598 = vmatpush1.bf16.msra.mxu0 %v1582
    %1599 = vmatprep.subr.bf16.mxu0 0
    %1600 = vmatpush1.bf16.msra.mxu0 %v1581
    %1601 = vmatprep.subr.bf16.mxu0 0
    %1602 = vmatpush1.bf16.msra.mxu0 %v1580
    %1603 = vmatprep.subr.bf16.mxu0 0
    %1604 = vmatpush1.bf16.msra.mxu0 %v1579
    %1605 = vmatprep.subr.bf16.mxu0 0
    %1606 = vmatpush1.bf16.msra.mxu0 %v1578
    %1607 = vmatprep.subr.bf16.mxu0 0
    %1608 = vmatpush1.bf16.msra.mxu0 %v1577
    %1609 = vmatprep.subr.bf16.mxu0 0
    %1610 = vmatpush2.bf16.msra.mxu0 0
    %1611 = vmatprep.subr.bf16.mxu0 0
    %1612 = vmatpush2.bf16.msra.mxu0 0
    %1613 = vmatprep.subr.bf16.mxu0 0
    %1614 = vmatpush2.bf16.msra.mxu0 0
    %1615 = vmatprep.subr.bf16.mxu0 0
    %1616 = vmatpush2.bf16.msra.mxu0 0
    %1617 = vmatprep.subr.bf16.mxu0 0
    %1618 = vmatpush2.bf16.msra.mxu0 0
    %1619 = vmatprep.subr.bf16.mxu0 0
    %1620 = vmatpush2.bf16.msra.mxu0 0
    %1621 = vmatprep.subr.bf16.mxu0 0
    %1622 = vmatpush2.bf16.msra.mxu0 0
    %1623 = vmatprep.subr.bf16.mxu0 0
    %1624 = vmatpush2.bf16.msra.mxu0 0
    %1625 = vmatprep.mubr.bf16.mxu0 0
    %1626 = vmatmul.mubr.bf16.gmra.mxu0 %v1556
    %v1627 = vpop.f32.mrf.mxu0
    %v1628 = vadd.f32 %v1560, %v1627
    %v1629 = vpop.f32.mrf.mxu0
    %v1630 = vpop.f32.mrf.mxu0
    %v1631 = vadd.f32 %v1560, %v1630
    %v1632 = vpop.f32.mrf.mxu0
    %1633 = vdwg.mxu0
    %v1634 = vmax.f32 %v1628, 0.0
    %v1635 = vmax.f32 %v1631, 0.0
    %v1636 = vpack.c.bf16 %v1635, %v1634
    %v1637 = vlaneseq
    %v1638 = vshrl.u32 %v1637, 7
    %v1639 = vsub.s32 4, %v1638
    %v1640 = vrot.slane %v1421, %v1639
    %v1657 = vunpack.c.l.b16 %v1389
    %v1658 = vunpack.c.l.b16 %v1391
    %v1659 = vunpack.c.l.b16 %v1393
    %v1660 = vunpack.c.l.b16 %v1395
    %v1661 = vunpack.c.l.b16 %v1397
    %v1662 = vunpack.c.l.b16 %v1399
    %v1663 = vunpack.c.l.b16 %v1401
    %v1664 = vunpack.c.l.b16 %v1403
    %v1665 = vunpack.c.l.b16 %v1405
    %v1666 = vunpack.c.l.b16 %v1407
    %v1667 = vunpack.c.l.b16 %v1409
    %v1668 = vunpack.c.l.b16 %v1411
    %v1669 = vunpack.c.l.b16 %v1413
    %v1670 = vunpack.c.l.b16 %v1415
    %v1671 = vunpack.c.l.b16 %v1417
    %v1672 = vunpack.c.l.b16 %v1419
    %v1673 = vpack.c.b16 %v1658, %v1657
    %v1674 = vpack.c.b16 %v1660, %v1659
    %v1675 = vpack.c.b16 %v1662, %v1661
    %v1676 = vpack.c.b16 %v1664, %v1663
    %v1677 = vpack.c.b16 %v1666, %v1665
    %v1678 = vpack.c.b16 %v1668, %v1667
    %v1679 = vpack.c.b16 %v1670, %v1669
    %v1680 = vpack.c.b16 %v1672, %v1671
    %1689 = vmatprep.subr.bf16.mxu0 0
    %1690 = vmatpush1.bf16.msra.mxu0 %v1680
    %1691 = vmatprep.subr.bf16.mxu0 0
    %1692 = vmatpush1.bf16.msra.mxu0 %v1679
    %1693 = vmatprep.subr.bf16.mxu0 0
    %1694 = vmatpush1.bf16.msra.mxu0 %v1678
    %1695 = vmatprep.subr.bf16.mxu0 0
    %1696 = vmatpush1.bf16.msra.mxu0 %v1677
    %1697 = vmatprep.subr.bf16.mxu0 0
    %1698 = vmatpush1.bf16.msra.mxu0 %v1676
    %1699 = vmatprep.subr.bf16.mxu0 0
    %1700 = vmatpush1.bf16.msra.mxu0 %v1675
    %1701 = vmatprep.subr.bf16.mxu0 0
    %1702 = vmatpush1.bf16.msra.mxu0 %v1674
    %1703 = vmatprep.subr.bf16.mxu0 0
    %1704 = vmatpush1.bf16.msra.mxu0 %v1673
    %1705 = vmatprep.subr.bf16.mxu0 0
    %1706 = vmatpush2.bf16.msra.mxu0 0
    %1707 = vmatprep.subr.bf16.mxu0 0
    %1708 = vmatpush2.bf16.msra.mxu0 0
    %1709 = vmatprep.subr.bf16.mxu0 0
    %1710 = vmatpush2.bf16.msra.mxu0 0
    %1711 = vmatprep.subr.bf16.mxu0 0
    %1712 = vmatpush2.bf16.msra.mxu0 0
    %1713 = vmatprep.subr.bf16.mxu0 0
    %1714 = vmatpush2.bf16.msra.mxu0 0
    %1715 = vmatprep.subr.bf16.mxu0 0
    %1716 = vmatpush2.bf16.msra.mxu0 0
    %1717 = vmatprep.subr.bf16.mxu0 0
    %1718 = vmatpush2.bf16.msra.mxu0 0
    %1719 = vmatprep.subr.bf16.mxu0 0
    %1720 = vmatpush2.bf16.msra.mxu0 0
    %1721 = vmatprep.mubr.bf16.mxu0 0
    %1722 = vmatmul.mubr.bf16.gmra.mxu0 %v1636
    %v1723 = vpop.f32.mrf.mxu0
    %v1724 = vadd.f32 %v1640, %v1723
    %v1725 = vpop.f32.mrf.mxu0
    %v1726 = vpop.f32.mrf.mxu0
    %v1727 = vadd.f32 %v1640, %v1726
    %v1728 = vpop.f32.mrf.mxu0
    %1729 = vdwg.mxu0
    %v1730 = vadd.f32 %v1554, %v1724
    %v1731 = vadd.f32 %v1555, %v1727
    %1732 = vadd.xlane.f32.xlu0 %v1730
    %v1733 = vpop.xlane.xlu0 %1732
    %1734 = vadd.xlane.f32.xlu0 %v1731
    %v1735 = vpop.xlane.xlu0 %1734
    %v1736 = vmul.f32 %v1733, %v205
    %v1737 = vmul.f32 %v1735, %v205
    %v1738 = vmul.f32 %v1730, %v1730
    %v1739 = vmul.f32 %v1731, %v1731
    %1740 = vadd.xlane.f32.xlu0 %v1738
    %v1741 = vpop.xlane.xlu0 %1740
    %1742 = vadd.xlane.f32.xlu0 %v1739
    %v1743 = vpop.xlane.xlu0 %1742
    %v1744 = vmul.f32 %v1741, %v205
    %v1745 = vmul.f32 %v1743, %v205
    %v1746 = vmul.f32 %v1736, %v1736
    %v1747 = vmul.f32 %v1737, %v1737
    %v1748 = vsub.f32 %v1744, %v1746
    %v1749 = vsub.f32 %v1745, %v1747
    %v1750 = vsub.f32 %v1730, %v1736
    %v1751 = vsub.f32 %v1731, %v1737
    %v1752 = vadd.f32 %v1748, 1e-05
    %v1753 = vadd.f32 %v1749, 1e-05
    %v1754 = vrsqrt.pop %v1752
    %v1755 = vrsqrt.pop %v1753
    %v1756 = vmul.f32 %v1750, %v1754
    %v1757 = vmul.f32 %v1751, %v1755
    %v1758 = vlaneseq
    %v1759 = vshrl.u32 %v1758, 7
    %v1760 = vsub.s32 5, %v1759
    %v1761 = vrot.slane %v1421, %v1760
    %v1762 = vmul.f32 %v1756, %v1761
    %v1763 = vmul.f32 %v1757, %v1761
    %v1764 = vlaneseq
    %v1765 = vshrl.u32 %v1764, 7
    %v1766 = vsub.s32 6, %v1765
    %v1767 = vrot.slane %v1421, %v1766
    %v1768 = vadd.f32 %v1762, %v1767
    %v1769 = vadd.f32 %v1763, %v1767
    %v1770 = vadd.f32 %v238, %v1768
    %v1771 = vadd.f32 %v239, %v1769
    %v1772 = vpack.c.bf16 %v1771, %v1770
    %s1773 = scalar_lea.vmem [#allocation5], 64
    %v1774 = vld [vmem:[%s1773] sm:$0xf]
    %v1775 = vld [vmem:[%s1773 + $0x4] sm:$0xf]
    %v1776 = vld [vmem:[%s1773 + $0x8] sm:$0xf]
    %v1777 = vld [vmem:[%s1773 + $0xc] sm:$0xf]
    %v1778 = vld [vmem:[%s1773 + $0x10] sm:$0xf]
    %v1779 = vld [vmem:[%s1773 + $0x14] sm:$0xf]
    %v1780 = vld [vmem:[%s1773 + $0x18] sm:$0xf]
    %v1781 = vld [vmem:[%s1773 + $0x1c] sm:$0xf]
    %v1782 = vld [vmem:[%s1773 + $0x20] sm:$0xf]
    %v1783 = vld [vmem:[%s1773 + $0x24] sm:$0xf]
    %v1784 = vld [vmem:[%s1773 + $0x28] sm:$0xf]
    %v1785 = vld [vmem:[%s1773 + $0x2c] sm:$0xf]
    %v1786 = vld [vmem:[%s1773 + $0x30] sm:$0xf]
    %v1787 = vld [vmem:[%s1773 + $0x34] sm:$0xf]
    %v1788 = vld [vmem:[%s1773 + $0x38] sm:$0xf]
    %v1789 = vld [vmem:[%s1773 + $0x3c] sm:$0xf]
    %v1790 = vlaneseq
    %v1791 = vshrl.u32 %v1790, 7
    %v1792 = vsub.s32 3, %v1791
    %v1793 = vrot.slane %v88, %v1792
    %v1810 = vunpack.c.l.b16 %v1774
    %v1811 = vunpack.c.l.b16 %v1775
    %v1812 = vunpack.c.l.b16 %v1776
    %v1813 = vunpack.c.l.b16 %v1777
    %v1814 = vunpack.c.l.b16 %v1778
    %v1815 = vunpack.c.l.b16 %v1779
    %v1816 = vunpack.c.l.b16 %v1780
    %v1817 = vunpack.c.l.b16 %v1781
    %v1818 = vunpack.c.l.b16 %v1782
    %v1819 = vunpack.c.l.b16 %v1783
    %v1820 = vunpack.c.l.b16 %v1784
    %v1821 = vunpack.c.l.b16 %v1785
    %v1822 = vunpack.c.l.b16 %v1786
    %v1823 = vunpack.c.l.b16 %v1787
    %v1824 = vunpack.c.l.b16 %v1788
    %v1825 = vunpack.c.l.b16 %v1789
    %v1826 = vpack.c.b16 %v1811, %v1810
    %v1827 = vpack.c.b16 %v1813, %v1812
    %v1828 = vpack.c.b16 %v1815, %v1814
    %v1829 = vpack.c.b16 %v1817, %v1816
    %v1830 = vpack.c.b16 %v1819, %v1818
    %v1831 = vpack.c.b16 %v1821, %v1820
    %v1832 = vpack.c.b16 %v1823, %v1822
    %v1833 = vpack.c.b16 %v1825, %v1824
    %1842 = vmatprep.subr.bf16.mxu0 0
    %1843 = vmatpush1.bf16.msra.mxu0 %v1833
    %1844 = vmatprep.subr.bf16.mxu0 0
    %1845 = vmatpush1.bf16.msra.mxu0 %v1832
    %1846 = vmatprep.subr.bf16.mxu0 0
    %1847 = vmatpush1.bf16.msra.mxu0 %v1831
    %1848 = vmatprep.subr.bf16.mxu0 0
    %1849 = vmatpush1.bf16.msra.mxu0 %v1830
    %1850 = vmatprep.subr.bf16.mxu0 0
    %1851 = vmatpush1.bf16.msra.mxu0 %v1829
    %1852 = vmatprep.subr.bf16.mxu0 0
    %1853 = vmatpush1.bf16.msra.mxu0 %v1828
    %1854 = vmatprep.subr.bf16.mxu0 0
    %1855 = vmatpush1.bf16.msra.mxu0 %v1827
    %1856 = vmatprep.subr.bf16.mxu0 0
    %1857 = vmatpush1.bf16.msra.mxu0 %v1826
    %1858 = vmatprep.subr.bf16.mxu0 0
    %1859 = vmatpush2.bf16.msra.mxu0 0
    %1860 = vmatprep.subr.bf16.mxu0 0
    %1861 = vmatpush2.bf16.msra.mxu0 0
    %1862 = vmatprep.subr.bf16.mxu0 0
    %1863 = vmatpush2.bf16.msra.mxu0 0
    %1864 = vmatprep.subr.bf16.mxu0 0
    %1865 = vmatpush2.bf16.msra.mxu0 0
    %1866 = vmatprep.subr.bf16.mxu0 0
    %1867 = vmatpush2.bf16.msra.mxu0 0
    %1868 = vmatprep.subr.bf16.mxu0 0
    %1869 = vmatpush2.bf16.msra.mxu0 0
    %1870 = vmatprep.subr.bf16.mxu0 0
    %1871 = vmatpush2.bf16.msra.mxu0 0
    %1872 = vmatprep.subr.bf16.mxu0 0
    %1873 = vmatpush2.bf16.msra.mxu0 0
    %1874 = vmatprep.mubr.bf16.mxu0 0
    %1875 = vmatmul.mubr.bf16.gmra.mxu0 %v1772
    %v1876 = vpop.f32.mrf.mxu0
    %v1877 = vadd.f32 %v1793, %v1876
    %v1878 = vpop.f32.mrf.mxu0
    %v1879 = vpop.f32.mrf.mxu0
    %v1880 = vadd.f32 %v1793, %v1879
    %v1881 = vpop.f32.mrf.mxu0
    %1882 = vdwg.mxu0
    %v1883 = vmax.f32 %v1877, 0.0
    %v1884 = vmax.f32 %v1880, 0.0
    %v1885 = vpack.c.bf16 %v1884, %v1883
    %s1886 = scalar_lea.vmem [#allocation5], 128
    %v1887 = vld [vmem:[%s1886] sm:$0xf]
    %v1888 = vld [vmem:[%s1886 + $0x4] sm:$0xf]
    %v1889 = vld [vmem:[%s1886 + $0x8] sm:$0xf]
    %v1890 = vld [vmem:[%s1886 + $0xc] sm:$0xf]
    %v1891 = vld [vmem:[%s1886 + $0x10] sm:$0xf]
    %v1892 = vld [vmem:[%s1886 + $0x14] sm:$0xf]
    %v1893 = vld [vmem:[%s1886 + $0x18] sm:$0xf]
    %v1894 = vld [vmem:[%s1886 + $0x1c] sm:$0xf]
    %v1895 = vld [vmem:[%s1886 + $0x20] sm:$0xf]
    %v1896 = vld [vmem:[%s1886 + $0x24] sm:$0xf]
    %v1897 = vld [vmem:[%s1886 + $0x28] sm:$0xf]
    %v1898 = vld [vmem:[%s1886 + $0x2c] sm:$0xf]
    %v1899 = vld [vmem:[%s1886 + $0x30] sm:$0xf]
    %v1900 = vld [vmem:[%s1886 + $0x34] sm:$0xf]
    %v1901 = vld [vmem:[%s1886 + $0x38] sm:$0xf]
    %v1902 = vld [vmem:[%s1886 + $0x3c] sm:$0xf]
    %v1903 = vlaneseq
    %v1904 = vshrl.u32 %v1903, 7
    %v1905 = vsub.s32 4, %v1904
    %v1906 = vrot.slane %v88, %v1905
    %v1923 = vunpack.c.l.b16 %v1887
    %v1924 = vunpack.c.l.b16 %v1888
    %v1925 = vunpack.c.l.b16 %v1889
    %v1926 = vunpack.c.l.b16 %v1890
    %v1927 = vunpack.c.l.b16 %v1891
    %v1928 = vunpack.c.l.b16 %v1892
    %v1929 = vunpack.c.l.b16 %v1893
    %v1930 = vunpack.c.l.b16 %v1894
    %v1931 = vunpack.c.l.b16 %v1895
    %v1932 = vunpack.c.l.b16 %v1896
    %v1933 = vunpack.c.l.b16 %v1897
    %v1934 = vunpack.c.l.b16 %v1898
    %v1935 = vunpack.c.l.b16 %v1899
    %v1936 = vunpack.c.l.b16 %v1900
    %v1937 = vunpack.c.l.b16 %v1901
    %v1938 = vunpack.c.l.b16 %v1902
    %v1939 = vpack.c.b16 %v1924, %v1923
    %v1940 = vpack.c.b16 %v1926, %v1925
    %v1941 = vpack.c.b16 %v1928, %v1927
    %v1942 = vpack.c.b16 %v1930, %v1929
    %v1943 = vpack.c.b16 %v1932, %v1931
    %v1944 = vpack.c.b16 %v1934, %v1933
    %v1945 = vpack.c.b16 %v1936, %v1935
    %v1946 = vpack.c.b16 %v1938, %v1937
    %1955 = vmatprep.subr.bf16.mxu0 0
    %1956 = vmatpush1.bf16.msra.mxu0 %v1946
    %1957 = vmatprep.subr.bf16.mxu0 0
    %1958 = vmatpush1.bf16.msra.mxu0 %v1945
    %1959 = vmatprep.subr.bf16.mxu0 0
    %1960 = vmatpush1.bf16.msra.mxu0 %v1944
    %1961 = vmatprep.subr.bf16.mxu0 0
    %1962 = vmatpush1.bf16.msra.mxu0 %v1943
    %1963 = vmatprep.subr.bf16.mxu0 0
    %1964 = vmatpush1.bf16.msra.mxu0 %v1942
    %1965 = vmatprep.subr.bf16.mxu0 0
    %1966 = vmatpush1.bf16.msra.mxu0 %v1941
    %1967 = vmatprep.subr.bf16.mxu0 0
    %1968 = vmatpush1.bf16.msra.mxu0 %v1940
    %1969 = vmatprep.subr.bf16.mxu0 0
    %1970 = vmatpush1.bf16.msra.mxu0 %v1939
    %1971 = vmatprep.subr.bf16.mxu0 0
    %1972 = vmatpush2.bf16.msra.mxu0 0
    %1973 = vmatprep.subr.bf16.mxu0 0
    %1974 = vmatpush2.bf16.msra.mxu0 0
    %1975 = vmatprep.subr.bf16.mxu0 0
    %1976 = vmatpush2.bf16.msra.mxu0 0
    %1977 = vmatprep.subr.bf16.mxu0 0
    %1978 = vmatpush2.bf16.msra.mxu0 0
    %1979 = vmatprep.subr.bf16.mxu0 0
    %1980 = vmatpush2.bf16.msra.mxu0 0
    %1981 = vmatprep.subr.bf16.mxu0 0
    %1982 = vmatpush2.bf16.msra.mxu0 0
    %1983 = vmatprep.subr.bf16.mxu0 0
    %1984 = vmatpush2.bf16.msra.mxu0 0
    %1985 = vmatprep.subr.bf16.mxu0 0
    %1986 = vmatpush2.bf16.msra.mxu0 0
    %1987 = vmatprep.mubr.bf16.mxu0 0
    %1988 = vmatmul.mubr.bf16.gmra.mxu0 %v1885
    %v1989 = vpop.f32.mrf.mxu0
    %v1990 = vadd.f32 %v1906, %v1989
    %v1991 = vpop.f32.mrf.mxu0
    %v1992 = vpop.f32.mrf.mxu0
    %v1993 = vadd.f32 %v1906, %v1992
    %v1994 = vpop.f32.mrf.mxu0
    %1995 = vdwg.mxu0
    %1996 = vst [vmem:[#allocation11] sm:$0xff] %v1990
    %1997 = vst [vmem:[#allocation11 + $0x8] sm:$0xff] %v1993
    // Predicated region
    $region42: #{tpu_custom_call.1} parent=1 // pred_check
      _
    $region43: #{tpu_custom_call.1} parent=1 // pred_check_branch
      %1999 = sbr.rel (0) target = $region45
    $region44: #{tpu_custom_call.1} parent=1 // pred_region
      %s2001 = ssub.s32 256, 256
      %2002 = vsyncadd [#allocation4], %s2001
      %s2003 = sshll.u32 [#allocation11], 4
      %s2004 = int_to_ptr.vmem [resolvable:$true] %s2003
      %2009 = dma.vmem_to_hbm [thread:$0]  %s2004, 256, %s5, [#allocation4], 128, 128, 8
    $region45: #{tpu_custom_call.1} parent=1 // pred_fallthru
      _
    // Predicated region
    $region46: #{tpu_custom_call.1} parent=1 // pred_check
      _
    $region47: #{tpu_custom_call.1} parent=1 // pred_check_branch
      %2011 = sbr.rel (0) target = $region49
    $region48: #{tpu_custom_call.1} parent=1 // pred_region
      %2012 = dma.done [#allocation4], 256
    $region49: #{tpu_custom_call.1} parent=1 // pred_fallthru
      _
    %2013 = vsyncpa [#allocation3], 1
    %2014 = vsyncpa [#allocation6], 1
    %2015 = vsyncpa [#allocation9], 1
    %2016 = vsyncpa [#allocation4], 1

</llo_original>
